<compile_context>
chip_gen: v7x
topology: tpu7x:2x2x1
jax: 0.10.0
libtpu: 0.0.40
codegen_flags: <defaults>
</compile_context>

<pallas_src>
import functools

import jax
import jax.numpy as jnp
from jax.experimental import pallas as pl
from jax.experimental.pallas import tpu as pltpu


def _lsae_lr_kernel(b, b_pad, x_ref, wenc_ref, benc_ref, whead_ref, bhead_ref,
                    out_ref, acc_ref):
    """Grid axis 0 tiles texture_dims; acc_ref accumulates the head logit."""
    n = pl.program_id(0)

    @pl.when(n == 0)
    def _():
        acc_ref[...] = jnp.zeros_like(acc_ref)

    # Fused frozen texture encoder for BOTH branches (left rows stacked on top
    # of right rows): one weight stream instead of two.
    t = jnp.tanh(
        jnp.dot(x_ref[...], wenc_ref[...], preferred_element_type=jnp.float32)
        + benc_ref[...])                              # [2*b_pad, tn]
    l_t = t[:b_pad]
    r_t = t[b_pad:]
    feat = jnp.abs(l_t - r_t)                         # [b_pad, tn]

    # Linear head partial product on the VPU + XLU lane-reduce (no 1-column
    # MXU matmul on the critical path).
    acc_ref[...] += jnp.sum(feat * whead_ref[...], axis=-1, keepdims=True)

    @pl.when(n == pl.num_programs(0) - 1)
    def _():
        acc = acc_ref[...]
        logit = acc[:b] + bhead_ref[0]
        out_ref[...] = jax.nn.sigmoid(logit)


def lsae_classifier_left_right(l_x, r_x, w_enc, b_enc, w_head, b_head):
    """l_x, r_x: [B, C, H, W] float32.  Returns [B, 1] float32."""
    B = l_x.shape[0]
    d_in = l_x.shape[1] * l_x.shape[2] * l_x.shape[3]
    t_dims = w_enc.shape[1]

    # Pad batch so the stacked matmul M dimension (2*b_pad) is a multiple of 8.
    b_pad = ((B + 3) // 4) * 4
    lx = l_x.reshape(B, d_in)
    rx = r_x.reshape(B, d_in)
    if b_pad != B:
        pad = ((0, b_pad - B), (0, 0))
        lx = jnp.pad(lx, pad)
        rx = jnp.pad(rx, pad)
    x_stacked = jnp.concatenate([lx, rx], axis=0)      # [2*b_pad, d_in]

    b_enc2 = b_enc.reshape(1, t_dims)
    w_head2 = w_head.reshape(1, t_dims)                # head as a row vector
    b_head1 = b_head.reshape(1)

    # Tile texture_dims so weight-tile DMA double-buffers against compute.
    tn = next((t for t in (512, 256, 128) if t_dims % t == 0), t_dims)
    n_blocks = t_dims // tn

    kernel = functools.partial(_lsae_lr_kernel, B, b_pad)

    # Right-sized VMEM request: double-buffered tiles + small residents + slack.
    f32 = 4
    vmem_need = (
        2 * (2 * b_pad) * d_in * f32      # stacked inputs (double-buffered)
        + 2 * d_in * tn * f32             # W_enc column tile x2 buffers
        + 4 * tn * f32                    # b_enc + w_head tiles x2 buffers
        + 4 * 8 * 128 * f32)              # out + acc (padded vreg tiles)
    vmem_limit = int(min(96 << 20, max(4 << 20, 2 * vmem_need)))

    flops = 2 * (2 * B) * d_in * t_dims + 4 * B * t_dims
    transcendentals = 2 * B * t_dims + B
    bytes_accessed = f32 * (2 * B * d_in + d_in * t_dims + 2 * t_dims + 1 + B)

    return pl.pallas_call(
        kernel,
        out_shape=jax.ShapeDtypeStruct((B, 1), jnp.float32),
        grid=(n_blocks,),
        in_specs=[
            pl.BlockSpec((2 * b_pad, d_in), lambda n: (0, 0)),   # stacked x (resident)
            pl.BlockSpec((d_in, tn), lambda n: (0, n)),          # W_enc column tile
            pl.BlockSpec((1, tn), lambda n: (0, n)),             # b_enc tile
            pl.BlockSpec((1, tn), lambda n: (0, n)),             # W_head tile
            pl.BlockSpec(memory_space=pltpu.MemorySpace.SMEM),   # b_head scalar
        ],
        out_specs=pl.BlockSpec((B, 1), lambda n: (0, 0)),
        scratch_shapes=[pltpu.VMEM((b_pad, 1), jnp.float32)],
        compiler_params=pltpu.CompilerParams(
            dimension_semantics=("arbitrary",),
            vmem_limit_bytes=vmem_limit),
        cost_estimate=pl.CostEstimate(
            flops=flops,
            transcendentals=transcendentals,
            bytes_accessed=bytes_accessed),
    )(x_stacked, w_enc, b_enc2, w_head2, b_head1)


def _reference(l_x, r_x, w_enc, b_enc, w_head, b_head):
    B = l_x.shape[0]
    lx = l_x.reshape(B, -1)
    rx = r_x.reshape(B, -1)
    l_t = jnp.tanh(lx @ w_enc + b_enc)
    r_t = jnp.tanh(rx @ w_enc + b_enc)
    feat = jnp.abs(l_t - r_t)
    return jax.nn.sigmoid(feat @ w_head + b_head)


if __name__ == "__main__":
    # Small shapes: batch=2, channels=4, spatial=16x16 -> flattened 1024;
    # texture_dims=1024 (module default).
    B, C, H, W = 2, 4, 16, 16
    D_IN = C * H * W            # 1024
    TEX = 1024                  # texture_dims

    key = jax.random.PRNGKey(0)
    k1, k2, k3, k4, k5, k6 = jax.random.split(key, 6)

    l_x = jax.random.normal(k1, (B, C, H, W), dtype=jnp.float32)
    r_x = jax.random.normal(k2, (B, C, H, W), dtype=jnp.float32)

    # Deterministic synthetic frozen parameters.
    # Encoder weight stored as [in, out]; head weight as [in, 1]
    # (equivalent to PyTorch Linear's W.T).
    w_enc = jax.random.normal(k3, (D_IN, TEX), dtype=jnp.float32) * (1.0 / jnp.sqrt(D_IN))
    b_enc = jax.random.normal(k4, (TEX,), dtype=jnp.float32) * 0.01
    w_head = jax.random.normal(k5, (TEX, 1), dtype=jnp.float32) * (1.0 / jnp.sqrt(TEX))
    b_head = jax.random.normal(k6, (1,), dtype=jnp.float32) * 0.01

    out = lsae_classifier_left_right(l_x, r_x, w_enc, b_enc, w_head, b_head)
    out = jax.block_until_ready(out)

    ref = _reference(l_x, r_x, w_enc, b_enc, w_head, b_head)
    assert out.shape == (B, 1), out.shape
    assert jnp.allclose(out, ref, atol=2e-5, rtol=2e-5), (out, ref)

    print("KERNEL_OK")
</pallas_src>

<mosaic_0001>
module attributes {stable_mosaic.version = 11 : i64} {
  func.func @_lsae_lr_kernel(%arg0: i32, %arg1: memref<8x1024xf32, #tpu.memory_space<vmem>>, %arg2: memref<1024x512xf32, #tpu.memory_space<vmem>>, %arg3: memref<1x512xf32, #tpu.memory_space<vmem>>, %arg4: memref<1x512xf32, #tpu.memory_space<vmem>>, %arg5: memref<1xf32, #tpu.memory_space<smem>>, %arg6: memref<2x1xf32, #tpu.memory_space<vmem>>, %arg7: memref<4x1xf32, #tpu.memory_space<vmem>>) attributes {dimension_semantics = [#tpu.dimension_semantics<arbitrary>], iteration_bounds = array<i64: 2>, scalar_prefetch = 0 : i64, scratch_operands = 1 : i64, tpu.core_type = #tpu.core_type<tc>, window_params = [{pipeline_mode = #tpu.pipeline_mode<synchronous>, transform_indices = @transform_0, window_bounds = array<i64: 8, 1024>}, {transform_indices = @transform_1, window_bounds = array<i64: 1024, 512>}, {transform_indices = @transform_2, window_bounds = array<i64: 1, 512>}, {transform_indices = @transform_3, window_bounds = array<i64: 1, 512>}, {transform_indices = @transform_4, window_bounds = array<i64: 1>}, {pipeline_mode = #tpu.pipeline_mode<synchronous>, transform_indices = @transform_5, window_bounds = array<i64: 2, 1>}]} {
    %c0_i32 = arith.constant 0 : i32
    %0 = arith.cmpi eq, %arg0, %c0_i32 : i32
    %1 = arith.extui %0 : i1 to i32
    %c0_i32_0 = arith.constant 0 : i32
    %2 = arith.cmpi ne, %1, %c0_i32_0 : i32
    scf.if %2 {
      %cst_14 = arith.constant 0.000000e+00 : f32
      %25 = vector.broadcast %cst_14 : f32 to vector<4x1xf32>
      %c0_15 = arith.constant 0 : index
      %c0_16 = arith.constant 0 : index
      %26 = vector.load %arg7[%c0_15, %c0_16] : memref<4x1xf32, #tpu.memory_space<vmem>>, vector<4x1xf32>
      tpu.vector_store %arg7[%c0_15, %c0_16], %25 {strides = array<i32>} : memref<4x1xf32, #tpu.memory_space<vmem>>, vector<4x1xf32>,
    } else {
    }
    %c0 = arith.constant 0 : index
    %c0_1 = arith.constant 0 : index
    %3 = vector.load %arg1[%c0, %c0_1] : memref<8x1024xf32, #tpu.memory_space<vmem>>, vector<8x1024xf32>
    %c0_2 = arith.constant 0 : index
    %c0_3 = arith.constant 0 : index
    %4 = vector.load %arg2[%c0_2, %c0_3] : memref<1024x512xf32, #tpu.memory_space<vmem>>, vector<1024x512xf32>
    %cst = arith.constant dense<0.000000e+00> : vector<8x512xf32>
    %5 = tpu.matmul %3, %4, %cst {dimension_numbers = #tpu.dot_dimension_numbers<[1], [0], [0], [1], [0, 0, 1, 1], [], []>} : vector<8x1024xf32>, vector<1024x512xf32>, vector<8x512xf32> -> vector<8x512xf32>
    %c0_4 = arith.constant 0 : index
    %c0_5 = arith.constant 0 : index
    %6 = vector.load %arg3[%c0_4, %c0_5] : memref<1x512xf32, #tpu.memory_space<vmem>>, vector<1x512xf32>
    %7 = vector.broadcast %6 : vector<1x512xf32> to vector<8x512xf32>
    %8 = arith.addf %5, %7 : vector<8x512xf32>
    %9 = math.tanh %8 : vector<8x512xf32>
    %10 = vector.extract_strided_slice %9 {offsets = [0, 0], sizes = [4, 512], strides = [1, 1]} : vector<8x512xf32> to vector<4x512xf32>
    %11 = vector.extract_strided_slice %9 {offsets = [4, 0], sizes = [4, 512], strides = [1, 1]} : vector<8x512xf32> to vector<4x512xf32>
    %12 = arith.subf %10, %11 : vector<4x512xf32>
    %13 = math.absf %12 : vector<4x512xf32>
    %c0_6 = arith.constant 0 : index
    %c0_7 = arith.constant 0 : index
    %14 = vector.load %arg7[%c0_6, %c0_7] : memref<4x1xf32, #tpu.memory_space<vmem>>, vector<4x1xf32>
    %c0_8 = arith.constant 0 : index
    %c0_9 = arith.constant 0 : index
    %15 = vector.load %arg4[%c0_8, %c0_9] : memref<1x512xf32, #tpu.memory_space<vmem>>, vector<1x512xf32>
    %16 = vector.broadcast %15 : vector<1x512xf32> to vector<4x512xf32>
    %17 = arith.mulf %13, %16 : vector<4x512xf32>
    %cst_10 = arith.constant dense<0.000000e+00> : vector<4xf32>
    %18 = vector.multi_reduction <add>, %17, %cst_10 [1] : vector<4x512xf32> to vector<4xf32>
    %19 = vector.shape_cast %18 : vector<4xf32> to vector<4x1xf32>
    %20 = arith.addf %14, %19 : vector<4x1xf32>
    %c0_11 = arith.constant 0 : index
    %c0_12 = arith.constant 0 : index
    %21 = vector.load %arg7[%c0_11, %c0_12] : memref<4x1xf32, #tpu.memory_space<vmem>>, vector<4x1xf32>
    tpu.vector_store %arg7[%c0_11, %c0_12], %20 {strides = array<i32>} : memref<4x1xf32, #tpu.memory_space<vmem>>, vector<4x1xf32>,
    %c1_i32 = arith.constant 1 : i32
    %22 = arith.cmpi eq, %arg0, %c1_i32 : i32
    %23 = arith.extui %22 : i1 to i32
    %c0_i32_13 = arith.constant 0 : i32
    %24 = arith.cmpi ne, %23, %c0_i32_13 : i32
    scf.if %24 {
      %c0_14 = arith.constant 0 : index
      %c0_15 = arith.constant 0 : index
      %25 = vector.load %arg7[%c0_14, %c0_15] : memref<4x1xf32, #tpu.memory_space<vmem>>, vector<4x1xf32>
      %26 = vector.extract_strided_slice %25 {offsets = [0, 0], sizes = [2, 1], strides = [1, 1]} : vector<4x1xf32> to vector<2x1xf32>
      %c0_16 = arith.constant 0 : index
      %27 = memref.load %arg5[%c0_16] : memref<1xf32, #tpu.memory_space<smem>>
      %28 = vector.broadcast %27 : f32 to vector<2x1xf32>
      %29 = arith.addf %26, %28 : vector<2x1xf32>
      %30 = arith.negf %29 : vector<2x1xf32>
      %31 = math.exp %30 : vector<2x1xf32>
      %cst_17 = arith.constant 1.000000e+00 : f32
      %32 = vector.broadcast %cst_17 : f32 to vector<2x1xf32>
      %33 = arith.addf %32, %31 : vector<2x1xf32>
      %34 = arith.divf %32, %33 : vector<2x1xf32>
      %c0_18 = arith.constant 0 : index
      %c0_19 = arith.constant 0 : index
      %35 = vector.load %arg6[%c0_18, %c0_19] : memref<2x1xf32, #tpu.memory_space<vmem>>, vector<2x1xf32>
      tpu.vector_store %arg6[%c0_18, %c0_19], %34 {strides = array<i32>} : memref<2x1xf32, #tpu.memory_space<vmem>>, vector<2x1xf32>,
    } else {
    }
    return
  }
  func.func @transform_0(%arg0: i32) -> (i32, i32) {
    %c0_i32 = arith.constant 0 : i32
    %c0_i32_0 = arith.constant 0 : i32
    %c0_i32_1 = arith.constant 0 : i32
    return %c0_i32, %c0_i32_0 : i32, i32
  }
  func.func @transform_1(%arg0: i32) -> (i32, i32) {
    %c0_i32 = arith.constant 0 : i32
    %c0_i32_0 = arith.constant 0 : i32
    return %c0_i32, %arg0 : i32, i32
  }
  func.func @transform_2(%arg0: i32) -> (i32, i32) {
    %c0_i32 = arith.constant 0 : i32
    %c0_i32_0 = arith.constant 0 : i32
    return %c0_i32, %arg0 : i32, i32
  }
  func.func @transform_3(%arg0: i32) -> (i32, i32) {
    %c0_i32 = arith.constant 0 : i32
    %c0_i32_0 = arith.constant 0 : i32
    return %c0_i32, %arg0 : i32, i32
  }
  func.func @transform_4(%arg0: i32) -> i32 {
    %c0_i32 = arith.constant 0 : i32
    %c0_i32_0 = arith.constant 0 : i32
    return %c0_i32 : i32
  }
  func.func @transform_5(%arg0: i32) -> (i32, i32) {
    %c0_i32 = arith.constant 0 : i32
    %c0_i32_0 = arith.constant 0 : i32
    %c0_i32_1 = arith.constant 0 : i32
    return %c0_i32, %c0_i32_0 : i32, i32
  }
}

</mosaic_0001>

<llo_original>
// kernel: tpu_custom_call.1
$region0: #{tpu_custom_call.1}
  #allocation0 [shape = 'u32[]', space=smem, size = 0x4, offset = 0x4, fixed_abs, tag = 'smem constant byte address 0x4 - core index']
  #allocation1 [shape = 'u32[144,128]{1,0:T(1,128)}', space=vmem, size = 0x12000, scoped, tag = 'internal scratch']
  #allocation2 [shape = 'f32[4,1]{1,0:T(4,128)}', space=vmem, size = 0x800, scoped, tag = 'scratch operand']
  #allocation3 [shape = 'f32[1]{0:T(128)S(6)}', space=smem, size = 0x200, scoped, tag = 'scoped memory for tpu_custom_call.1']
  %s0 = inlined_call_operand.hbm [shape: f32[8,1024], index: 0, kind: input, shape index: {}]
  %s1 = inlined_call_operand.hbm [shape: f32[1024,1024], index: 1, kind: input, shape index: {}]
  %s2 = inlined_call_operand.hbm [shape: f32[1,1024], index: 2, kind: input, shape index: {}]
  %s3 = inlined_call_operand.hbm [shape: f32[1,1024], index: 3, kind: input, shape index: {}]
  %s4 = inlined_call_operand.<no memory space> [shape: f32[1], index: 4, kind: input, shape index: {}]
  %s5 = inlined_call_operand.vmem [shape: f32[2,1], index: 5, kind: output, shape index: {}]
  %s6 = sld [smem:[#allocation0]]
  $region77: #{tpu_custom_call.1} parent=0
    _
  %s8 = ssub.s32 1, %s6
  %s9 = scalar_select 0, %s8, %s6
  %10 = sst [smem:[#allocation3]] %s4
  $region1: #{tpu_custom_call.1} parent=0
    #allocation4 [shape = 'u8[32768]{0}', space=vmem, size = 0x8000, scoped, tag = 'input window, operand 0, single buffered']
    #allocation5 [shape = 's32[2]{0}', space=sflag, size = 0x8, scoped, tag = 'scoped memory for tpu_custom_call.1']
    #allocation6 [shape = 'u8[4194304]{0}', space=vmem, size = 0x400000, scoped, tag = 'input window, operand 1']
    #allocation7 [shape = 's32[2]{0}', space=sflag, size = 0x8, scoped, tag = 'scoped memory for tpu_custom_call.1']
    #allocation8 [shape = 'u8[4096]{0}', space=vmem, size = 0x1000, scoped, tag = 'input window, operand 2']
    #allocation9 [shape = 'u8[4096]{0}', space=vmem, size = 0x1000, scoped, tag = 'input window, operand 3']
    #allocation10 [shape = 's32[2]{0}', space=sflag, size = 0x8, scoped, tag = 'scoped memory for tpu_custom_call.1']
    %11 = vsyncpa [#allocation5], 0
    %12 = vsyncpa [#allocation7], 0
    %s13 = scalar_lea.sflag [#allocation7], 1
    %14 = vsyncpa %s13, 0
    %15 = vsyncpa [#allocation10], 0
    %s16 = scalar_lea.sflag [#allocation10], 1
    %17 = vsyncpa %s16, 0
    loop: start=0, step=1, limit=4
    $region2: #{tpu_custom_call.1} parent=1 // loop_pre_header
      _
    $region3: #{tpu_custom_call.1} parent=1 // loop_header
      %s19 = sphi 0, %s23
      %p20 = scmp.ge.s32.totalorder %s19, 4
      %s27 = sphi 0, %s27
      %s29 = sphi 0, %s27
      %s30 = sphi 0, %s29
      %s44 = sphi 0, %s30
      %s50 = sphi 0, %s52
      %s53 = sphi 0, %s50
      %s54 = sphi 0, %s53
      %s70 = sphi 0, %s54
      %s76 = sphi 0, %s78
      %s79 = sphi 0, %s76
      %s80 = sphi 0, %s79
      %s96 = sphi 0, %s80
      %s102 = sphi 0, %s104
      %s105 = sphi 0, %s102
      %s106 = sphi 0, %s105
      %s122 = sphi 0, %s106
      %s126 = sphi 0, %s126
      %s128 = sphi 0, %s126
      %s129 = sphi 0, %s128
      %s143 = sphi 0, %s129
      %s147 = sphi 0, %s147
      %s149 = sphi 0, %s147
      %s150 = sphi 0, %s149
      %s164 = sphi 0, %s150
    $region4: #{tpu_custom_call.1} parent=1 // loop_header_branch
      %22 = sbr.rel (%p20) target = $region8
    $region5: #{tpu_custom_call.1} parent=1 // loop_body
      %s24 = ssub.s32 %s19, 1
      %s25 = ssub.s32 %s19, 2
      %s26 = sadd.s32 %s19, 1
      %s28 = sadd.s32 %s27, 1
      %p31 = scmp.eq.s32.totalorder %s19, 1
      %p32 = scmp.ne.s32.totalorder %s27, %s29
      %p33 = scmp.eq.s32.totalorder %s19, 0
      %p34 = por %p32, %p33
      %p35 = scmp.ne.s32.totalorder %s27, %s29
      %p36 = scmp.eq.s32.totalorder %s24, 1
      %p37 = por %p35, %p36
      %p38 = scmp.ne.s32.totalorder %s29, %s30
      %p39 = scmp.eq.s32.totalorder %s24, 0
      %p40 = por %p38, %p39
      %p41 = scmp.ne.s32.totalorder %s29, %s30
      %p42 = scmp.eq.s32.totalorder %s25, 1
      %p43 = por %p41, %p42
      %p45 = scmp.ne.s32.totalorder %s30, %s44
      %p46 = scmp.eq.s32.totalorder %s25, 0
      %p47 = por %p45, %p46
      %s48 = ssub.s32 %s19, %s26
      %p49 = scmp.eq.s32.totalorder %s48, 0
      %s51 = sadd.s32 %s50, 1
      %s52 = scalar_select %p49, %s50, %s51
      %p55 = pneg %p49
      %p56 = scmp.eq.s32.totalorder %s19, 1
      %p57 = por %p55, %p56
      %p58 = scmp.ne.s32.totalorder %s50, %s53
      %p59 = scmp.eq.s32.totalorder %s19, 0
      %p60 = por %p58, %p59
      %p61 = scmp.ne.s32.totalorder %s50, %s53
      %p62 = scmp.eq.s32.totalorder %s24, 1
      %p63 = por %p61, %p62
      %p64 = scmp.ne.s32.totalorder %s53, %s54
      %p65 = scmp.eq.s32.totalorder %s24, 0
      %p66 = por %p64, %p65
      %p67 = scmp.ne.s32.totalorder %s53, %s54
      %p68 = scmp.eq.s32.totalorder %s25, 1
      %p69 = por %p67, %p68
      %p71 = scmp.ne.s32.totalorder %s54, %s70
      %p72 = scmp.eq.s32.totalorder %s25, 0
      %p73 = por %p71, %p72
      %s74 = ssub.s32 %s19, %s26
      %p75 = scmp.eq.s32.totalorder %s74, 0
      %s77 = sadd.s32 %s76, 1
      %s78 = scalar_select %p75, %s76, %s77
      %p81 = pneg %p75
      %p82 = scmp.eq.s32.totalorder %s19, 1
      %p83 = por %p81, %p82
      %p84 = scmp.ne.s32.totalorder %s76, %s79
      %p85 = scmp.eq.s32.totalorder %s19, 0
      %p86 = por %p84, %p85
      %p87 = scmp.ne.s32.totalorder %s76, %s79
      %p88 = scmp.eq.s32.totalorder %s24, 1
      %p89 = por %p87, %p88
      %p90 = scmp.ne.s32.totalorder %s79, %s80
      %p91 = scmp.eq.s32.totalorder %s24, 0
      %p92 = por %p90, %p91
      %p93 = scmp.ne.s32.totalorder %s79, %s80
      %p94 = scmp.eq.s32.totalorder %s25, 1
      %p95 = por %p93, %p94
      %p97 = scmp.ne.s32.totalorder %s80, %s96
      %p98 = scmp.eq.s32.totalorder %s25, 0
      %p99 = por %p97, %p98
      %s100 = ssub.s32 %s19, %s26
      %p101 = scmp.eq.s32.totalorder %s100, 0
      %s103 = sadd.s32 %s102, 1
      %s104 = scalar_select %p101, %s102, %s103
      %p107 = pneg %p101
      %p108 = scmp.eq.s32.totalorder %s19, 1
      %p109 = por %p107, %p108
      %p110 = scmp.ne.s32.totalorder %s102, %s105
      %p111 = scmp.eq.s32.totalorder %s19, 0
      %p112 = por %p110, %p111
      %p113 = scmp.ne.s32.totalorder %s102, %s105
      %p114 = scmp.eq.s32.totalorder %s24, 1
      %p115 = por %p113, %p114
      %p116 = scmp.ne.s32.totalorder %s105, %s106
      %p117 = scmp.eq.s32.totalorder %s24, 0
      %p118 = por %p116, %p117
      %p119 = scmp.ne.s32.totalorder %s105, %s106
      %p120 = scmp.eq.s32.totalorder %s25, 1
      %p121 = por %p119, %p120
      %p123 = scmp.ne.s32.totalorder %s106, %s122
      %p124 = scmp.eq.s32.totalorder %s25, 0
      %p125 = por %p123, %p124
      %s127 = sadd.s32 %s126, 1
      %p130 = scmp.eq.s32.totalorder %s19, 1
      %p131 = scmp.ne.s32.totalorder %s126, %s128
      %p132 = scmp.eq.s32.totalorder %s19, 0
      %p133 = por %p131, %p132
      %p134 = scmp.ne.s32.totalorder %s126, %s128
      %p135 = scmp.eq.s32.totalorder %s24, 1
      %p136 = por %p134, %p135
      %p137 = scmp.ne.s32.totalorder %s128, %s129
      %p138 = scmp.eq.s32.totalorder %s24, 0
      %p139 = por %p137, %p138
      %p140 = scmp.ne.s32.totalorder %s128, %s129
      %p141 = scmp.eq.s32.totalorder %s25, 1
      %p142 = por %p140, %p141
      %p144 = scmp.ne.s32.totalorder %s129, %s143
      %p145 = scmp.eq.s32.totalorder %s25, 0
      %p146 = por %p144, %p145
      %s148 = sadd.s32 %s147, 1
      %p151 = scmp.eq.s32.totalorder %s19, 1
      %p152 = scmp.ne.s32.totalorder %s147, %s149
      %p153 = scmp.eq.s32.totalorder %s19, 0
      %p154 = por %p152, %p153
      %p155 = scmp.ne.s32.totalorder %s147, %s149
      %p156 = scmp.eq.s32.totalorder %s24, 1
      %p157 = por %p155, %p156
      %p158 = scmp.ne.s32.totalorder %s149, %s150
      %p159 = scmp.eq.s32.totalorder %s24, 0
      %p160 = por %p158, %p159
      %p161 = scmp.ne.s32.totalorder %s149, %s150
      %p162 = scmp.eq.s32.totalorder %s25, 1
      %p163 = por %p161, %p162
      %p165 = scmp.ne.s32.totalorder %s150, %s164
      %p166 = scmp.eq.s32.totalorder %s25, 0
      %p167 = por %p165, %p166
      %p168 = scmp.le.s32.totalorder 1, %s19
      %p169 = scmp.lt.s32.totalorder %s19, 3
      %p170 = pnand %p168, %p169
      %p171 = pneg %p170
      // Predicated region
      $region9: #{tpu_custom_call.1} parent=5 // pred_check
        _
      $region10: #{tpu_custom_call.1} parent=5 // pred_check_branch
        %173 = sbr.rel (%p170) target = $region12
      $region11: #{tpu_custom_call.1} parent=5 // pred_region
        %s174 = ssub.s32 %s19, 1
        // Predicated region
        $region13: #{tpu_custom_call.1} parent=11 // pred_check
          %p175 = pneg %p40
        $region14: #{tpu_custom_call.1} parent=11 // pred_check_branch
          %177 = sbr.rel (%p175) target = $region16
        $region15: #{tpu_custom_call.1} parent=11 // pred_region
          %s179 = ssub.s32 1024, 1024
          %180 = vsyncadd [#allocation5], %s179
          %s182 = sshll.u32 [#allocation4], 4
          %s183 = int_to_ptr.vmem [resolvable:$true] %s182
          %185 = dma.hbm_to_vmem [thread:$0]  %s0, 1024, %s183, [#allocation5]
        $region16: #{tpu_custom_call.1} parent=11 // pred_fallthru
          _
        // Predicated region
        $region17: #{tpu_custom_call.1} parent=11 // pred_check
          %p186 = pneg %p139
        $region18: #{tpu_custom_call.1} parent=11 // pred_check_branch
          %188 = sbr.rel (%p186) target = $region20
        $region19: #{tpu_custom_call.1} parent=11 // pred_region
          _
        $region20: #{tpu_custom_call.1} parent=11 // pred_fallthru
          _
      $region12: #{tpu_custom_call.1} parent=5 // pred_fallthru
        _
      %p189 = scmp.lt.s32.totalorder %s19, 2
      // Predicated region
      $region21: #{tpu_custom_call.1} parent=5 // pred_check
        %p190 = pneg %p189
      $region22: #{tpu_custom_call.1} parent=5 // pred_check_branch
        %192 = sbr.rel (%p190) target = $region24
      $region23: #{tpu_custom_call.1} parent=5 // pred_region
        // Predicated region
        $region25: #{tpu_custom_call.1} parent=23 // pred_check
          %p193 = pneg %p60
        $region26: #{tpu_custom_call.1} parent=23 // pred_check_branch
          %195 = sbr.rel (%p193) target = $region28
        $region27: #{tpu_custom_call.1} parent=23 // pred_region
          %s196 = sand.u32 %s19, 1
          %s197 = scalar_lea.sflag [#allocation7], %s196
          %s198 = sand.u32 %s50, 1
          %s199 = smul.addr %s198, 4096
          %s200 = scalar_lea.vmem [#allocation6], %s199
          %s201 = smul.u32 4, %s19
          %s203 = ssub.s32 65536, 65536
          %204 = vsyncadd %s197, %s203
          %s205 = smul.addr %s201, 128
          %s206 = scalar_lea.hbm %s1, %s205
          %s207 = sshll.u32 %s200, 4
          %s208 = int_to_ptr.vmem [resolvable:$true] %s207
          %213 = dma.hbm_to_vmem [thread:$0]  %s206, 65536, %s208, %s197, 1024, 512, 32
        $region28: #{tpu_custom_call.1} parent=23 // pred_fallthru
          _
        // Predicated region
        $region29: #{tpu_custom_call.1} parent=23 // pred_check
          %p214 = pneg %p86
        $region30: #{tpu_custom_call.1} parent=23 // pred_check_branch
          %216 = sbr.rel (%p214) target = $region32
        $region31: #{tpu_custom_call.1} parent=23 // pred_region
          %s217 = sand.u32 %s19, 1
          %s218 = scalar_lea.sflag [#allocation7], %s217
          %s219 = sand.u32 %s76, 1
          %s220 = smul.addr %s219, 4
          %s221 = scalar_lea.vmem [#allocation8], %s220
          %s222 = smul.u32 4, %s19
          %s224 = ssub.s32 64, 64
          %225 = vsyncadd %s218, %s224
          %s226 = smul.addr %s222, 16
          %s227 = scalar_lea.hbm %s2, %s226
          %s229 = sshll.u32 %s221, 4
          %s230 = int_to_ptr.vmem [resolvable:$true] %s229
          %232 = dma.hbm_to_vmem [thread:$0]  %s227, 64, %s230, %s218
        $region32: #{tpu_custom_call.1} parent=23 // pred_fallthru
          _
        // Predicated region
        $region33: #{tpu_custom_call.1} parent=23 // pred_check
          %p233 = pneg %p112
        $region34: #{tpu_custom_call.1} parent=23 // pred_check_branch
          %235 = sbr.rel (%p233) target = $region36
        $region35: #{tpu_custom_call.1} parent=23 // pred_region
          %s236 = sand.u32 %s102, 1
          %s237 = scalar_lea.sflag [#allocation10], %s236
          %s238 = sand.u32 %s102, 1
          %s239 = smul.addr %s238, 4
          %s240 = scalar_lea.vmem [#allocation9], %s239
          %s241 = smul.u32 4, %s19
          %s243 = ssub.s32 64, 64
          %244 = vsyncadd %s237, %s243
          %s245 = smul.addr %s241, 16
          %s246 = scalar_lea.hbm %s3, %s245
          %s248 = sshll.u32 %s240, 4
          %s249 = int_to_ptr.vmem [resolvable:$true] %s248
          %251 = dma.hbm_to_vmem [thread:$0]  %s246, 64, %s249, %s237
        $region36: #{tpu_custom_call.1} parent=23 // pred_fallthru
          _
      $region24: #{tpu_custom_call.1} parent=5 // pred_fallthru
        _
      %p252 = scmp.le.s32.totalorder 1, %s19
      %p253 = scmp.lt.s32.totalorder %s19, 3
      %p254 = pnand %p252, %p253
      %p255 = pneg %p254
      // Predicated region
      $region37: #{tpu_custom_call.1} parent=5 // pred_check
        _
      $region38: #{tpu_custom_call.1} parent=5 // pred_check_branch
        %257 = sbr.rel (%p254) target = $region40
      $region39: #{tpu_custom_call.1} parent=5 // pred_region
        %s258 = ssub.s32 %s19, 1
        // Predicated region
        $region41: #{tpu_custom_call.1} parent=39 // pred_check
          %p259 = pneg %p40
        $region42: #{tpu_custom_call.1} parent=39 // pred_check_branch
          %261 = sbr.rel (%p259) target = $region44
        $region43: #{tpu_custom_call.1} parent=39 // pred_region
          %262 = dma.done [#allocation5], 1024
        $region44: #{tpu_custom_call.1} parent=39 // pred_fallthru
          _
        %s263 = sand.u32 %s24, 1
        %s264 = scalar_lea.sflag [#allocation7], %s263
        %s265 = sand.u32 %s53, 1
        %s266 = smul.addr %s265, 4096
        %s267 = scalar_lea.vmem [#allocation6], %s266
        // Predicated region
        $region45: #{tpu_custom_call.1} parent=39 // pred_check
          %p268 = pneg %p66
        $region46: #{tpu_custom_call.1} parent=39 // pred_check_branch
          %270 = sbr.rel (%p268) target = $region48
        $region47: #{tpu_custom_call.1} parent=39 // pred_region
          %271 = dma.done %s264, 65536
        $region48: #{tpu_custom_call.1} parent=39 // pred_fallthru
          _
        %s272 = sand.u32 %s24, 1
        %s273 = scalar_lea.sflag [#allocation7], %s272
        %s274 = sand.u32 %s79, 1
        %s275 = smul.addr %s274, 4
        %s276 = scalar_lea.vmem [#allocation8], %s275
        // Predicated region
        $region49: #{tpu_custom_call.1} parent=39 // pred_check
          %p277 = pneg %p92
        $region50: #{tpu_custom_call.1} parent=39 // pred_check_branch
          %279 = sbr.rel (%p277) target = $region52
        $region51: #{tpu_custom_call.1} parent=39 // pred_region
          %280 = dma.done %s273, 64
        $region52: #{tpu_custom_call.1} parent=39 // pred_fallthru
          _
        %s281 = sand.u32 %s105, 1
        %s282 = scalar_lea.sflag [#allocation10], %s281
        %s283 = sand.u32 %s105, 1
        %s284 = smul.addr %s283, 4
        %s285 = scalar_lea.vmem [#allocation9], %s284
        // Predicated region
        $region53: #{tpu_custom_call.1} parent=39 // pred_check
          %p286 = pneg %p118
        $region54: #{tpu_custom_call.1} parent=39 // pred_check_branch
          %288 = sbr.rel (%p286) target = $region56
        $region55: #{tpu_custom_call.1} parent=39 // pred_region
          %289 = dma.done %s282, 64
        $region56: #{tpu_custom_call.1} parent=39 // pred_fallthru
          _
        %p290 = pneg %p40
        %p291 = pneg %p37
        %s292 = sand.u32 %s24, 1
        %s293 = scalar_lea.sflag [#allocation7], %s292
        %s294 = sand.u32 %s53, 1
        %s295 = smul.addr %s294, 4096
        %s296 = scalar_lea.vmem [#allocation6], %s295
        %p297 = pneg %p66
        %p298 = pneg %p63
        %s299 = sand.u32 %s24, 1
        %s300 = scalar_lea.sflag [#allocation7], %s299
        %s301 = sand.u32 %s79, 1
        %s302 = smul.addr %s301, 4
        %s303 = scalar_lea.vmem [#allocation8], %s302
        %p304 = pneg %p92
        %p305 = pneg %p89
        %s306 = sand.u32 %s105, 1
        %s307 = scalar_lea.sflag [#allocation10], %s306
        %s308 = sand.u32 %s105, 1
        %s309 = smul.addr %s308, 4
        %s310 = scalar_lea.vmem [#allocation9], %s309
        %p311 = pneg %p118
        %p312 = pneg %p115
        %p313 = pneg %p139
        %p314 = pneg %p136
        %p315 = pneg %p160
        %p316 = pneg %p157
        %s317 = smul.u32 4, %s24
        %s318 = smul.u32 4, %s24
        %s319 = smul.u32 4, %s24
        %p320 = scmp.eq.s32.totalorder %s24, 0
        // Predicated region
        $region57: #{tpu_custom_call.1} parent=39 // pred_check
          %p321 = pneg %p320
        $region58: #{tpu_custom_call.1} parent=39 // pred_check_branch
          %323 = sbr.rel (%p321) target = $region60
        $region59: #{tpu_custom_call.1} parent=39 // pred_region
          %vm324 = vcmask 3072
          %325 = vst.msk [vmem:[#allocation2] sm:$0xf] %vm324, 0.0
        $region60: #{tpu_custom_call.1} parent=39 // pred_fallthru
          _
        %v326 = vld [vmem:[#allocation4] sm:$0xff]
        %v327 = vld [vmem:[#allocation4 + $0x8] sm:$0xff]
        %v328 = vld [vmem:[#allocation4 + $0x10] sm:$0xff]
        %v329 = vld [vmem:[#allocation4 + $0x18] sm:$0xff]
        %v330 = vld [vmem:[#allocation4 + $0x20] sm:$0xff]
        %v331 = vld [vmem:[#allocation4 + $0x28] sm:$0xff]
        %v332 = vld [vmem:[#allocation4 + $0x30] sm:$0xff]
        %v333 = vld [vmem:[#allocation4 + $0x38] sm:$0xff]
        %v334 = vld [vmem:[%s267] sm:$0xff]
        %v335 = vld [vmem:[%s267 + $0x8] sm:$0xff]
        %v336 = vld [vmem:[%s267 + $0x10] sm:$0xff]
        %v337 = vld [vmem:[%s267 + $0x18] sm:$0xff]
        %v338 = vld [vmem:[%s267 + $0x20] sm:$0xff]
        %v339 = vld [vmem:[%s267 + $0x28] sm:$0xff]
        %v340 = vld [vmem:[%s267 + $0x30] sm:$0xff]
        %v341 = vld [vmem:[%s267 + $0x38] sm:$0xff]
        %v342 = vld [vmem:[%s267 + $0x40] sm:$0xff]
        %v343 = vld [vmem:[%s267 + $0x48] sm:$0xff]
        %v344 = vld [vmem:[%s267 + $0x50] sm:$0xff]
        %v345 = vld [vmem:[%s267 + $0x58] sm:$0xff]
        %v346 = vld [vmem:[%s267 + $0x60] sm:$0xff]
        %v347 = vld [vmem:[%s267 + $0x68] sm:$0xff]
        %v348 = vld [vmem:[%s267 + $0x70] sm:$0xff]
        %v349 = vld [vmem:[%s267 + $0x78] sm:$0xff]
        %v350 = vld [vmem:[%s267 + $0x80] sm:$0xff]
        %v351 = vld [vmem:[%s267 + $0x88] sm:$0xff]
        %v352 = vld [vmem:[%s267 + $0x90] sm:$0xff]
        %v353 = vld [vmem:[%s267 + $0x98] sm:$0xff]
        %v354 = vld [vmem:[%s267 + $0xa0] sm:$0xff]
        %v355 = vld [vmem:[%s267 + $0xa8] sm:$0xff]
        %v356 = vld [vmem:[%s267 + $0xb0] sm:$0xff]
        %v357 = vld [vmem:[%s267 + $0xb8] sm:$0xff]
        %v358 = vld [vmem:[%s267 + $0xc0] sm:$0xff]
        %v359 = vld [vmem:[%s267 + $0xc8] sm:$0xff]
        %v360 = vld [vmem:[%s267 + $0xd0] sm:$0xff]
        %v361 = vld [vmem:[%s267 + $0xd8] sm:$0xff]
        %v362 = vld [vmem:[%s267 + $0xe0] sm:$0xff]
        %v363 = vld [vmem:[%s267 + $0xe8] sm:$0xff]
        %v364 = vld [vmem:[%s267 + $0xf0] sm:$0xff]
        %v365 = vld [vmem:[%s267 + $0xf8] sm:$0xff]
        %v366 = vld [vmem:[%s267 + $0x100] sm:$0xff]
        %v367 = vld [vmem:[%s267 + $0x108] sm:$0xff]
        %v368 = vld [vmem:[%s267 + $0x110] sm:$0xff]
        %v369 = vld [vmem:[%s267 + $0x118] sm:$0xff]
        %v370 = vld [vmem:[%s267 + $0x120] sm:$0xff]
        %v371 = vld [vmem:[%s267 + $0x128] sm:$0xff]
        %v372 = vld [vmem:[%s267 + $0x130] sm:$0xff]
        %v373 = vld [vmem:[%s267 + $0x138] sm:$0xff]
        %v374 = vld [vmem:[%s267 + $0x140] sm:$0xff]
        %v375 = vld [vmem:[%s267 + $0x148] sm:$0xff]
        %v376 = vld [vmem:[%s267 + $0x150] sm:$0xff]
        %v377 = vld [vmem:[%s267 + $0x158] sm:$0xff]
        %v378 = vld [vmem:[%s267 + $0x160] sm:$0xff]
        %v379 = vld [vmem:[%s267 + $0x168] sm:$0xff]
        %v380 = vld [vmem:[%s267 + $0x170] sm:$0xff]
        %v381 = vld [vmem:[%s267 + $0x178] sm:$0xff]
        %v382 = vld [vmem:[%s267 + $0x180] sm:$0xff]
        %v383 = vld [vmem:[%s267 + $0x188] sm:$0xff]
        %v384 = vld [vmem:[%s267 + $0x190] sm:$0xff]
        %v385 = vld [vmem:[%s267 + $0x198] sm:$0xff]
        %v386 = vld [vmem:[%s267 + $0x1a0] sm:$0xff]
        %v387 = vld [vmem:[%s267 + $0x1a8] sm:$0xff]
        %v388 = vld [vmem:[%s267 + $0x1b0] sm:$0xff]
        %v389 = vld [vmem:[%s267 + $0x1b8] sm:$0xff]
        %v390 = vld [vmem:[%s267 + $0x1c0] sm:$0xff]
        %v391 = vld [vmem:[%s267 + $0x1c8] sm:$0xff]
        %v392 = vld [vmem:[%s267 + $0x1d0] sm:$0xff]
        %v393 = vld [vmem:[%s267 + $0x1d8] sm:$0xff]
        %v394 = vld [vmem:[%s267 + $0x1e0] sm:$0xff]
        %v395 = vld [vmem:[%s267 + $0x1e8] sm:$0xff]
        %v396 = vld [vmem:[%s267 + $0x1f0] sm:$0xff]
        %v397 = vld [vmem:[%s267 + $0x1f8] sm:$0xff]
        %v398 = vld [vmem:[%s267 + $0x200] sm:$0xff]
        %v399 = vld [vmem:[%s267 + $0x208] sm:$0xff]
        %v400 = vld [vmem:[%s267 + $0x210] sm:$0xff]
        %v401 = vld [vmem:[%s267 + $0x218] sm:$0xff]
        %v402 = vld [vmem:[%s267 + $0x220] sm:$0xff]
        %v403 = vld [vmem:[%s267 + $0x228] sm:$0xff]
        %v404 = vld [vmem:[%s267 + $0x230] sm:$0xff]
        %v405 = vld [vmem:[%s267 + $0x238] sm:$0xff]
        %v406 = vld [vmem:[%s267 + $0x240] sm:$0xff]
        %v407 = vld [vmem:[%s267 + $0x248] sm:$0xff]
        %v408 = vld [vmem:[%s267 + $0x250] sm:$0xff]
        %v409 = vld [vmem:[%s267 + $0x258] sm:$0xff]
        %v410 = vld [vmem:[%s267 + $0x260] sm:$0xff]
        %v411 = vld [vmem:[%s267 + $0x268] sm:$0xff]
        %v412 = vld [vmem:[%s267 + $0x270] sm:$0xff]
        %v413 = vld [vmem:[%s267 + $0x278] sm:$0xff]
        %v414 = vld [vmem:[%s267 + $0x280] sm:$0xff]
        %v415 = vld [vmem:[%s267 + $0x288] sm:$0xff]
        %v416 = vld [vmem:[%s267 + $0x290] sm:$0xff]
        %v417 = vld [vmem:[%s267 + $0x298] sm:$0xff]
        %v418 = vld [vmem:[%s267 + $0x2a0] sm:$0xff]
        %v419 = vld [vmem:[%s267 + $0x2a8] sm:$0xff]
        %v420 = vld [vmem:[%s267 + $0x2b0] sm:$0xff]
        %v421 = vld [vmem:[%s267 + $0x2b8] sm:$0xff]
        %v422 = vld [vmem:[%s267 + $0x2c0] sm:$0xff]
        %v423 = vld [vmem:[%s267 + $0x2c8] sm:$0xff]
        %v424 = vld [vmem:[%s267 + $0x2d0] sm:$0xff]
        %v425 = vld [vmem:[%s267 + $0x2d8] sm:$0xff]
        %v426 = vld [vmem:[%s267 + $0x2e0] sm:$0xff]
        %v427 = vld [vmem:[%s267 + $0x2e8] sm:$0xff]
        %v428 = vld [vmem:[%s267 + $0x2f0] sm:$0xff]
        %v429 = vld [vmem:[%s267 + $0x2f8] sm:$0xff]
        %v430 = vld [vmem:[%s267 + $0x300] sm:$0xff]
        %v431 = vld [vmem:[%s267 + $0x308] sm:$0xff]
        %v432 = vld [vmem:[%s267 + $0x310] sm:$0xff]
        %v433 = vld [vmem:[%s267 + $0x318] sm:$0xff]
        %v434 = vld [vmem:[%s267 + $0x320] sm:$0xff]
        %v435 = vld [vmem:[%s267 + $0x328] sm:$0xff]
        %v436 = vld [vmem:[%s267 + $0x330] sm:$0xff]
        %v437 = vld [vmem:[%s267 + $0x338] sm:$0xff]
        %v438 = vld [vmem:[%s267 + $0x340] sm:$0xff]
        %v439 = vld [vmem:[%s267 + $0x348] sm:$0xff]
        %v440 = vld [vmem:[%s267 + $0x350] sm:$0xff]
        %v441 = vld [vmem:[%s267 + $0x358] sm:$0xff]
        %v442 = vld [vmem:[%s267 + $0x360] sm:$0xff]
        %v443 = vld [vmem:[%s267 + $0x368] sm:$0xff]
        %v444 = vld [vmem:[%s267 + $0x370] sm:$0xff]
        %v445 = vld [vmem:[%s267 + $0x378] sm:$0xff]
        %v446 = vld [vmem:[%s267 + $0x380] sm:$0xff]
        %v447 = vld [vmem:[%s267 + $0x388] sm:$0xff]
        %v448 = vld [vmem:[%s267 + $0x390] sm:$0xff]
        %v449 = vld [vmem:[%s267 + $0x398] sm:$0xff]
        %v450 = vld [vmem:[%s267 + $0x3a0] sm:$0xff]
        %v451 = vld [vmem:[%s267 + $0x3a8] sm:$0xff]
        %v452 = vld [vmem:[%s267 + $0x3b0] sm:$0xff]
        %v453 = vld [vmem:[%s267 + $0x3b8] sm:$0xff]
        %v454 = vld [vmem:[%s267 + $0x3c0] sm:$0xff]
        %v455 = vld [vmem:[%s267 + $0x3c8] sm:$0xff]
        %v456 = vld [vmem:[%s267 + $0x3d0] sm:$0xff]
        %v457 = vld [vmem:[%s267 + $0x3d8] sm:$0xff]
        %v458 = vld [vmem:[%s267 + $0x3e0] sm:$0xff]
        %v459 = vld [vmem:[%s267 + $0x3e8] sm:$0xff]
        %v460 = vld [vmem:[%s267 + $0x3f0] sm:$0xff]
        %v461 = vld [vmem:[%s267 + $0x3f8] sm:$0xff]
        %v462 = vld [vmem:[%s267 + $0x400] sm:$0xff]
        %v463 = vld [vmem:[%s267 + $0x408] sm:$0xff]
        %v464 = vld [vmem:[%s267 + $0x410] sm:$0xff]
        %v465 = vld [vmem:[%s267 + $0x418] sm:$0xff]
        %v466 = vld [vmem:[%s267 + $0x420] sm:$0xff]
        %v467 = vld [vmem:[%s267 + $0x428] sm:$0xff]
        %v468 = vld [vmem:[%s267 + $0x430] sm:$0xff]
        %v469 = vld [vmem:[%s267 + $0x438] sm:$0xff]
        %v470 = vld [vmem:[%s267 + $0x440] sm:$0xff]
        %v471 = vld [vmem:[%s267 + $0x448] sm:$0xff]
        %v472 = vld [vmem:[%s267 + $0x450] sm:$0xff]
        %v473 = vld [vmem:[%s267 + $0x458] sm:$0xff]
        %v474 = vld [vmem:[%s267 + $0x460] sm:$0xff]
        %v475 = vld [vmem:[%s267 + $0x468] sm:$0xff]
        %v476 = vld [vmem:[%s267 + $0x470] sm:$0xff]
        %v477 = vld [vmem:[%s267 + $0x478] sm:$0xff]
        %v478 = vld [vmem:[%s267 + $0x480] sm:$0xff]
        %v479 = vld [vmem:[%s267 + $0x488] sm:$0xff]
        %v480 = vld [vmem:[%s267 + $0x490] sm:$0xff]
        %v481 = vld [vmem:[%s267 + $0x498] sm:$0xff]
        %v482 = vld [vmem:[%s267 + $0x4a0] sm:$0xff]
        %v483 = vld [vmem:[%s267 + $0x4a8] sm:$0xff]
        %v484 = vld [vmem:[%s267 + $0x4b0] sm:$0xff]
        %v485 = vld [vmem:[%s267 + $0x4b8] sm:$0xff]
        %v486 = vld [vmem:[%s267 + $0x4c0] sm:$0xff]
        %v487 = vld [vmem:[%s267 + $0x4c8] sm:$0xff]
        %v488 = vld [vmem:[%s267 + $0x4d0] sm:$0xff]
        %v489 = vld [vmem:[%s267 + $0x4d8] sm:$0xff]
        %v490 = vld [vmem:[%s267 + $0x4e0] sm:$0xff]
        %v491 = vld [vmem:[%s267 + $0x4e8] sm:$0xff]
        %v492 = vld [vmem:[%s267 + $0x4f0] sm:$0xff]
        %v493 = vld [vmem:[%s267 + $0x4f8] sm:$0xff]
        %v494 = vld [vmem:[%s267 + $0x500] sm:$0xff]
        %v495 = vld [vmem:[%s267 + $0x508] sm:$0xff]
        %v496 = vld [vmem:[%s267 + $0x510] sm:$0xff]
        %v497 = vld [vmem:[%s267 + $0x518] sm:$0xff]
        %v498 = vld [vmem:[%s267 + $0x520] sm:$0xff]
        %v499 = vld [vmem:[%s267 + $0x528] sm:$0xff]
        %v500 = vld [vmem:[%s267 + $0x530] sm:$0xff]
        %v501 = vld [vmem:[%s267 + $0x538] sm:$0xff]
        %v502 = vld [vmem:[%s267 + $0x540] sm:$0xff]
        %v503 = vld [vmem:[%s267 + $0x548] sm:$0xff]
        %v504 = vld [vmem:[%s267 + $0x550] sm:$0xff]
        %v505 = vld [vmem:[%s267 + $0x558] sm:$0xff]
        %v506 = vld [vmem:[%s267 + $0x560] sm:$0xff]
        %v507 = vld [vmem:[%s267 + $0x568] sm:$0xff]
        %v508 = vld [vmem:[%s267 + $0x570] sm:$0xff]
        %v509 = vld [vmem:[%s267 + $0x578] sm:$0xff]
        %v510 = vld [vmem:[%s267 + $0x580] sm:$0xff]
        %v511 = vld [vmem:[%s267 + $0x588] sm:$0xff]
        %v512 = vld [vmem:[%s267 + $0x590] sm:$0xff]
        %v513 = vld [vmem:[%s267 + $0x598] sm:$0xff]
        %v514 = vld [vmem:[%s267 + $0x5a0] sm:$0xff]
        %v515 = vld [vmem:[%s267 + $0x5a8] sm:$0xff]
        %v516 = vld [vmem:[%s267 + $0x5b0] sm:$0xff]
        %v517 = vld [vmem:[%s267 + $0x5b8] sm:$0xff]
        %v518 = vld [vmem:[%s267 + $0x5c0] sm:$0xff]
        %v519 = vld [vmem:[%s267 + $0x5c8] sm:$0xff]
        %v520 = vld [vmem:[%s267 + $0x5d0] sm:$0xff]
        %v521 = vld [vmem:[%s267 + $0x5d8] sm:$0xff]
        %v522 = vld [vmem:[%s267 + $0x5e0] sm:$0xff]
        %v523 = vld [vmem:[%s267 + $0x5e8] sm:$0xff]
        %v524 = vld [vmem:[%s267 + $0x5f0] sm:$0xff]
        %v525 = vld [vmem:[%s267 + $0x5f8] sm:$0xff]
        %v526 = vld [vmem:[%s267 + $0x600] sm:$0xff]
        %v527 = vld [vmem:[%s267 + $0x608] sm:$0xff]
        %v528 = vld [vmem:[%s267 + $0x610] sm:$0xff]
        %v529 = vld [vmem:[%s267 + $0x618] sm:$0xff]
        %v530 = vld [vmem:[%s267 + $0x620] sm:$0xff]
        %v531 = vld [vmem:[%s267 + $0x628] sm:$0xff]
        %v532 = vld [vmem:[%s267 + $0x630] sm:$0xff]
        %v533 = vld [vmem:[%s267 + $0x638] sm:$0xff]
        %v534 = vld [vmem:[%s267 + $0x640] sm:$0xff]
        %v535 = vld [vmem:[%s267 + $0x648] sm:$0xff]
        %v536 = vld [vmem:[%s267 + $0x650] sm:$0xff]
        %v537 = vld [vmem:[%s267 + $0x658] sm:$0xff]
        %v538 = vld [vmem:[%s267 + $0x660] sm:$0xff]
        %v539 = vld [vmem:[%s267 + $0x668] sm:$0xff]
        %v540 = vld [vmem:[%s267 + $0x670] sm:$0xff]
        %v541 = vld [vmem:[%s267 + $0x678] sm:$0xff]
        %v542 = vld [vmem:[%s267 + $0x680] sm:$0xff]
        %v543 = vld [vmem:[%s267 + $0x688] sm:$0xff]
        %v544 = vld [vmem:[%s267 + $0x690] sm:$0xff]
        %v545 = vld [vmem:[%s267 + $0x698] sm:$0xff]
        %v546 = vld [vmem:[%s267 + $0x6a0] sm:$0xff]
        %v547 = vld [vmem:[%s267 + $0x6a8] sm:$0xff]
        %v548 = vld [vmem:[%s267 + $0x6b0] sm:$0xff]
        %v549 = vld [vmem:[%s267 + $0x6b8] sm:$0xff]
        %v550 = vld [vmem:[%s267 + $0x6c0] sm:$0xff]
        %v551 = vld [vmem:[%s267 + $0x6c8] sm:$0xff]
        %v552 = vld [vmem:[%s267 + $0x6d0] sm:$0xff]
        %v553 = vld [vmem:[%s267 + $0x6d8] sm:$0xff]
        %v554 = vld [vmem:[%s267 + $0x6e0] sm:$0xff]
        %v555 = vld [vmem:[%s267 + $0x6e8] sm:$0xff]
        %v556 = vld [vmem:[%s267 + $0x6f0] sm:$0xff]
        %v557 = vld [vmem:[%s267 + $0x6f8] sm:$0xff]
        %v558 = vld [vmem:[%s267 + $0x700] sm:$0xff]
        %v559 = vld [vmem:[%s267 + $0x708] sm:$0xff]
        %v560 = vld [vmem:[%s267 + $0x710] sm:$0xff]
        %v561 = vld [vmem:[%s267 + $0x718] sm:$0xff]
        %v562 = vld [vmem:[%s267 + $0x720] sm:$0xff]
        %v563 = vld [vmem:[%s267 + $0x728] sm:$0xff]
        %v564 = vld [vmem:[%s267 + $0x730] sm:$0xff]
        %v565 = vld [vmem:[%s267 + $0x738] sm:$0xff]
        %v566 = vld [vmem:[%s267 + $0x740] sm:$0xff]
        %v567 = vld [vmem:[%s267 + $0x748] sm:$0xff]
        %v568 = vld [vmem:[%s267 + $0x750] sm:$0xff]
        %v569 = vld [vmem:[%s267 + $0x758] sm:$0xff]
        %v570 = vld [vmem:[%s267 + $0x760] sm:$0xff]
        %v571 = vld [vmem:[%s267 + $0x768] sm:$0xff]
        %v572 = vld [vmem:[%s267 + $0x770] sm:$0xff]
        %v573 = vld [vmem:[%s267 + $0x778] sm:$0xff]
        %v574 = vld [vmem:[%s267 + $0x780] sm:$0xff]
        %v575 = vld [vmem:[%s267 + $0x788] sm:$0xff]
        %v576 = vld [vmem:[%s267 + $0x790] sm:$0xff]
        %v577 = vld [vmem:[%s267 + $0x798] sm:$0xff]
        %v578 = vld [vmem:[%s267 + $0x7a0] sm:$0xff]
        %v579 = vld [vmem:[%s267 + $0x7a8] sm:$0xff]
        %v580 = vld [vmem:[%s267 + $0x7b0] sm:$0xff]
        %v581 = vld [vmem:[%s267 + $0x7b8] sm:$0xff]
        %v582 = vld [vmem:[%s267 + $0x7c0] sm:$0xff]
        %v583 = vld [vmem:[%s267 + $0x7c8] sm:$0xff]
        %v584 = vld [vmem:[%s267 + $0x7d0] sm:$0xff]
        %v585 = vld [vmem:[%s267 + $0x7d8] sm:$0xff]
        %v586 = vld [vmem:[%s267 + $0x7e0] sm:$0xff]
        %v587 = vld [vmem:[%s267 + $0x7e8] sm:$0xff]
        %v588 = vld [vmem:[%s267 + $0x7f0] sm:$0xff]
        %v589 = vld [vmem:[%s267 + $0x7f8] sm:$0xff]
        %v590 = vld [vmem:[%s267 + $0x800] sm:$0xff]
        %v591 = vld [vmem:[%s267 + $0x808] sm:$0xff]
        %v592 = vld [vmem:[%s267 + $0x810] sm:$0xff]
        %v593 = vld [vmem:[%s267 + $0x818] sm:$0xff]
        %v594 = vld [vmem:[%s267 + $0x820] sm:$0xff]
        %v595 = vld [vmem:[%s267 + $0x828] sm:$0xff]
        %v596 = vld [vmem:[%s267 + $0x830] sm:$0xff]
        %v597 = vld [vmem:[%s267 + $0x838] sm:$0xff]
        %v598 = vld [vmem:[%s267 + $0x840] sm:$0xff]
        %v599 = vld [vmem:[%s267 + $0x848] sm:$0xff]
        %v600 = vld [vmem:[%s267 + $0x850] sm:$0xff]
        %v601 = vld [vmem:[%s267 + $0x858] sm:$0xff]
        %v602 = vld [vmem:[%s267 + $0x860] sm:$0xff]
        %v603 = vld [vmem:[%s267 + $0x868] sm:$0xff]
        %v604 = vld [vmem:[%s267 + $0x870] sm:$0xff]
        %v605 = vld [vmem:[%s267 + $0x878] sm:$0xff]
        %v606 = vld [vmem:[%s267 + $0x880] sm:$0xff]
        %v607 = vld [vmem:[%s267 + $0x888] sm:$0xff]
        %v608 = vld [vmem:[%s267 + $0x890] sm:$0xff]
        %v609 = vld [vmem:[%s267 + $0x898] sm:$0xff]
        %v610 = vld [vmem:[%s267 + $0x8a0] sm:$0xff]
        %v611 = vld [vmem:[%s267 + $0x8a8] sm:$0xff]
        %v612 = vld [vmem:[%s267 + $0x8b0] sm:$0xff]
        %v613 = vld [vmem:[%s267 + $0x8b8] sm:$0xff]
        %v614 = vld [vmem:[%s267 + $0x8c0] sm:$0xff]
        %v615 = vld [vmem:[%s267 + $0x8c8] sm:$0xff]
        %v616 = vld [vmem:[%s267 + $0x8d0] sm:$0xff]
        %v617 = vld [vmem:[%s267 + $0x8d8] sm:$0xff]
        %v618 = vld [vmem:[%s267 + $0x8e0] sm:$0xff]
        %v619 = vld [vmem:[%s267 + $0x8e8] sm:$0xff]
        %v620 = vld [vmem:[%s267 + $0x8f0] sm:$0xff]
        %v621 = vld [vmem:[%s267 + $0x8f8] sm:$0xff]
        %v622 = vld [vmem:[%s267 + $0x900] sm:$0xff]
        %v623 = vld [vmem:[%s267 + $0x908] sm:$0xff]
        %v624 = vld [vmem:[%s267 + $0x910] sm:$0xff]
        %v625 = vld [vmem:[%s267 + $0x918] sm:$0xff]
        %v626 = vld [vmem:[%s267 + $0x920] sm:$0xff]
        %v627 = vld [vmem:[%s267 + $0x928] sm:$0xff]
        %v628 = vld [vmem:[%s267 + $0x930] sm:$0xff]
        %v629 = vld [vmem:[%s267 + $0x938] sm:$0xff]
        %v630 = vld [vmem:[%s267 + $0x940] sm:$0xff]
        %v631 = vld [vmem:[%s267 + $0x948] sm:$0xff]
        %v632 = vld [vmem:[%s267 + $0x950] sm:$0xff]
        %v633 = vld [vmem:[%s267 + $0x958] sm:$0xff]
        %v634 = vld [vmem:[%s267 + $0x960] sm:$0xff]
        %v635 = vld [vmem:[%s267 + $0x968] sm:$0xff]
        %v636 = vld [vmem:[%s267 + $0x970] sm:$0xff]
        %v637 = vld [vmem:[%s267 + $0x978] sm:$0xff]
        %v638 = vld [vmem:[%s267 + $0x980] sm:$0xff]
        %v639 = vld [vmem:[%s267 + $0x988] sm:$0xff]
        %v640 = vld [vmem:[%s267 + $0x990] sm:$0xff]
        %v641 = vld [vmem:[%s267 + $0x998] sm:$0xff]
        %v642 = vld [vmem:[%s267 + $0x9a0] sm:$0xff]
        %v643 = vld [vmem:[%s267 + $0x9a8] sm:$0xff]
        %v644 = vld [vmem:[%s267 + $0x9b0] sm:$0xff]
        %v645 = vld [vmem:[%s267 + $0x9b8] sm:$0xff]
        %v646 = vld [vmem:[%s267 + $0x9c0] sm:$0xff]
        %v647 = vld [vmem:[%s267 + $0x9c8] sm:$0xff]
        %v648 = vld [vmem:[%s267 + $0x9d0] sm:$0xff]
        %v649 = vld [vmem:[%s267 + $0x9d8] sm:$0xff]
        %v650 = vld [vmem:[%s267 + $0x9e0] sm:$0xff]
        %v651 = vld [vmem:[%s267 + $0x9e8] sm:$0xff]
        %v652 = vld [vmem:[%s267 + $0x9f0] sm:$0xff]
        %v653 = vld [vmem:[%s267 + $0x9f8] sm:$0xff]
        %v654 = vld [vmem:[%s267 + $0xa00] sm:$0xff]
        %v655 = vld [vmem:[%s267 + $0xa08] sm:$0xff]
        %v656 = vld [vmem:[%s267 + $0xa10] sm:$0xff]
        %v657 = vld [vmem:[%s267 + $0xa18] sm:$0xff]
        %v658 = vld [vmem:[%s267 + $0xa20] sm:$0xff]
        %v659 = vld [vmem:[%s267 + $0xa28] sm:$0xff]
        %v660 = vld [vmem:[%s267 + $0xa30] sm:$0xff]
        %v661 = vld [vmem:[%s267 + $0xa38] sm:$0xff]
        %v662 = vld [vmem:[%s267 + $0xa40] sm:$0xff]
        %v663 = vld [vmem:[%s267 + $0xa48] sm:$0xff]
        %v664 = vld [vmem:[%s267 + $0xa50] sm:$0xff]
        %v665 = vld [vmem:[%s267 + $0xa58] sm:$0xff]
        %v666 = vld [vmem:[%s267 + $0xa60] sm:$0xff]
        %v667 = vld [vmem:[%s267 + $0xa68] sm:$0xff]
        %v668 = vld [vmem:[%s267 + $0xa70] sm:$0xff]
        %v669 = vld [vmem:[%s267 + $0xa78] sm:$0xff]
        %v670 = vld [vmem:[%s267 + $0xa80] sm:$0xff]
        %v671 = vld [vmem:[%s267 + $0xa88] sm:$0xff]
        %v672 = vld [vmem:[%s267 + $0xa90] sm:$0xff]
        %v673 = vld [vmem:[%s267 + $0xa98] sm:$0xff]
        %v674 = vld [vmem:[%s267 + $0xaa0] sm:$0xff]
        %v675 = vld [vmem:[%s267 + $0xaa8] sm:$0xff]
        %v676 = vld [vmem:[%s267 + $0xab0] sm:$0xff]
        %v677 = vld [vmem:[%s267 + $0xab8] sm:$0xff]
        %v678 = vld [vmem:[%s267 + $0xac0] sm:$0xff]
        %v679 = vld [vmem:[%s267 + $0xac8] sm:$0xff]
        %v680 = vld [vmem:[%s267 + $0xad0] sm:$0xff]
        %v681 = vld [vmem:[%s267 + $0xad8] sm:$0xff]
        %v682 = vld [vmem:[%s267 + $0xae0] sm:$0xff]
        %v683 = vld [vmem:[%s267 + $0xae8] sm:$0xff]
        %v684 = vld [vmem:[%s267 + $0xaf0] sm:$0xff]
        %v685 = vld [vmem:[%s267 + $0xaf8] sm:$0xff]
        %v686 = vld [vmem:[%s267 + $0xb00] sm:$0xff]
        %v687 = vld [vmem:[%s267 + $0xb08] sm:$0xff]
        %v688 = vld [vmem:[%s267 + $0xb10] sm:$0xff]
        %v689 = vld [vmem:[%s267 + $0xb18] sm:$0xff]
        %v690 = vld [vmem:[%s267 + $0xb20] sm:$0xff]
        %v691 = vld [vmem:[%s267 + $0xb28] sm:$0xff]
        %v692 = vld [vmem:[%s267 + $0xb30] sm:$0xff]
        %v693 = vld [vmem:[%s267 + $0xb38] sm:$0xff]
        %v694 = vld [vmem:[%s267 + $0xb40] sm:$0xff]
        %v695 = vld [vmem:[%s267 + $0xb48] sm:$0xff]
        %v696 = vld [vmem:[%s267 + $0xb50] sm:$0xff]
        %v697 = vld [vmem:[%s267 + $0xb58] sm:$0xff]
        %v698 = vld [vmem:[%s267 + $0xb60] sm:$0xff]
        %v699 = vld [vmem:[%s267 + $0xb68] sm:$0xff]
        %v700 = vld [vmem:[%s267 + $0xb70] sm:$0xff]
        %v701 = vld [vmem:[%s267 + $0xb78] sm:$0xff]
        %v702 = vld [vmem:[%s267 + $0xb80] sm:$0xff]
        %v703 = vld [vmem:[%s267 + $0xb88] sm:$0xff]
        %v704 = vld [vmem:[%s267 + $0xb90] sm:$0xff]
        %v705 = vld [vmem:[%s267 + $0xb98] sm:$0xff]
        %v706 = vld [vmem:[%s267 + $0xba0] sm:$0xff]
        %v707 = vld [vmem:[%s267 + $0xba8] sm:$0xff]
        %v708 = vld [vmem:[%s267 + $0xbb0] sm:$0xff]
        %v709 = vld [vmem:[%s267 + $0xbb8] sm:$0xff]
        %v710 = vld [vmem:[%s267 + $0xbc0] sm:$0xff]
        %v711 = vld [vmem:[%s267 + $0xbc8] sm:$0xff]
        %v712 = vld [vmem:[%s267 + $0xbd0] sm:$0xff]
        %v713 = vld [vmem:[%s267 + $0xbd8] sm:$0xff]
        %v714 = vld [vmem:[%s267 + $0xbe0] sm:$0xff]
        %v715 = vld [vmem:[%s267 + $0xbe8] sm:$0xff]
        %v716 = vld [vmem:[%s267 + $0xbf0] sm:$0xff]
        %v717 = vld [vmem:[%s267 + $0xbf8] sm:$0xff]
        %v718 = vld [vmem:[%s267 + $0xc00] sm:$0xff]
        %v719 = vld [vmem:[%s267 + $0xc08] sm:$0xff]
        %v720 = vld [vmem:[%s267 + $0xc10] sm:$0xff]
        %v721 = vld [vmem:[%s267 + $0xc18] sm:$0xff]
        %v722 = vld [vmem:[%s267 + $0xc20] sm:$0xff]
        %v723 = vld [vmem:[%s267 + $0xc28] sm:$0xff]
        %v724 = vld [vmem:[%s267 + $0xc30] sm:$0xff]
        %v725 = vld [vmem:[%s267 + $0xc38] sm:$0xff]
        %v726 = vld [vmem:[%s267 + $0xc40] sm:$0xff]
        %v727 = vld [vmem:[%s267 + $0xc48] sm:$0xff]
        %v728 = vld [vmem:[%s267 + $0xc50] sm:$0xff]
        %v729 = vld [vmem:[%s267 + $0xc58] sm:$0xff]
        %v730 = vld [vmem:[%s267 + $0xc60] sm:$0xff]
        %v731 = vld [vmem:[%s267 + $0xc68] sm:$0xff]
        %v732 = vld [vmem:[%s267 + $0xc70] sm:$0xff]
        %v733 = vld [vmem:[%s267 + $0xc78] sm:$0xff]
        %v734 = vld [vmem:[%s267 + $0xc80] sm:$0xff]
        %v735 = vld [vmem:[%s267 + $0xc88] sm:$0xff]
        %v736 = vld [vmem:[%s267 + $0xc90] sm:$0xff]
        %v737 = vld [vmem:[%s267 + $0xc98] sm:$0xff]
        %v738 = vld [vmem:[%s267 + $0xca0] sm:$0xff]
        %v739 = vld [vmem:[%s267 + $0xca8] sm:$0xff]
        %v740 = vld [vmem:[%s267 + $0xcb0] sm:$0xff]
        %v741 = vld [vmem:[%s267 + $0xcb8] sm:$0xff]
        %v742 = vld [vmem:[%s267 + $0xcc0] sm:$0xff]
        %v743 = vld [vmem:[%s267 + $0xcc8] sm:$0xff]
        %v744 = vld [vmem:[%s267 + $0xcd0] sm:$0xff]
        %v745 = vld [vmem:[%s267 + $0xcd8] sm:$0xff]
        %v746 = vld [vmem:[%s267 + $0xce0] sm:$0xff]
        %v747 = vld [vmem:[%s267 + $0xce8] sm:$0xff]
        %v748 = vld [vmem:[%s267 + $0xcf0] sm:$0xff]
        %v749 = vld [vmem:[%s267 + $0xcf8] sm:$0xff]
        %v750 = vld [vmem:[%s267 + $0xd00] sm:$0xff]
        %v751 = vld [vmem:[%s267 + $0xd08] sm:$0xff]
        %v752 = vld [vmem:[%s267 + $0xd10] sm:$0xff]
        %v753 = vld [vmem:[%s267 + $0xd18] sm:$0xff]
        %v754 = vld [vmem:[%s267 + $0xd20] sm:$0xff]
        %v755 = vld [vmem:[%s267 + $0xd28] sm:$0xff]
        %v756 = vld [vmem:[%s267 + $0xd30] sm:$0xff]
        %v757 = vld [vmem:[%s267 + $0xd38] sm:$0xff]
        %v758 = vld [vmem:[%s267 + $0xd40] sm:$0xff]
        %v759 = vld [vmem:[%s267 + $0xd48] sm:$0xff]
        %v760 = vld [vmem:[%s267 + $0xd50] sm:$0xff]
        %v761 = vld [vmem:[%s267 + $0xd58] sm:$0xff]
        %v762 = vld [vmem:[%s267 + $0xd60] sm:$0xff]
        %v763 = vld [vmem:[%s267 + $0xd68] sm:$0xff]
        %v764 = vld [vmem:[%s267 + $0xd70] sm:$0xff]
        %v765 = vld [vmem:[%s267 + $0xd78] sm:$0xff]
        %v766 = vld [vmem:[%s267 + $0xd80] sm:$0xff]
        %v767 = vld [vmem:[%s267 + $0xd88] sm:$0xff]
        %v768 = vld [vmem:[%s267 + $0xd90] sm:$0xff]
        %v769 = vld [vmem:[%s267 + $0xd98] sm:$0xff]
        %v770 = vld [vmem:[%s267 + $0xda0] sm:$0xff]
        %v771 = vld [vmem:[%s267 + $0xda8] sm:$0xff]
        %v772 = vld [vmem:[%s267 + $0xdb0] sm:$0xff]
        %v773 = vld [vmem:[%s267 + $0xdb8] sm:$0xff]
        %v774 = vld [vmem:[%s267 + $0xdc0] sm:$0xff]
        %v775 = vld [vmem:[%s267 + $0xdc8] sm:$0xff]
        %v776 = vld [vmem:[%s267 + $0xdd0] sm:$0xff]
        %v777 = vld [vmem:[%s267 + $0xdd8] sm:$0xff]
        %v778 = vld [vmem:[%s267 + $0xde0] sm:$0xff]
        %v779 = vld [vmem:[%s267 + $0xde8] sm:$0xff]
        %v780 = vld [vmem:[%s267 + $0xdf0] sm:$0xff]
        %v781 = vld [vmem:[%s267 + $0xdf8] sm:$0xff]
        %v782 = vld [vmem:[%s267 + $0xe00] sm:$0xff]
        %v783 = vld [vmem:[%s267 + $0xe08] sm:$0xff]
        %v784 = vld [vmem:[%s267 + $0xe10] sm:$0xff]
        %v785 = vld [vmem:[%s267 + $0xe18] sm:$0xff]
        %v786 = vld [vmem:[%s267 + $0xe20] sm:$0xff]
        %v787 = vld [vmem:[%s267 + $0xe28] sm:$0xff]
        %v788 = vld [vmem:[%s267 + $0xe30] sm:$0xff]
        %v789 = vld [vmem:[%s267 + $0xe38] sm:$0xff]
        %v790 = vld [vmem:[%s267 + $0xe40] sm:$0xff]
        %v791 = vld [vmem:[%s267 + $0xe48] sm:$0xff]
        %v792 = vld [vmem:[%s267 + $0xe50] sm:$0xff]
        %v793 = vld [vmem:[%s267 + $0xe58] sm:$0xff]
        %v794 = vld [vmem:[%s267 + $0xe60] sm:$0xff]
        %v795 = vld [vmem:[%s267 + $0xe68] sm:$0xff]
        %v796 = vld [vmem:[%s267 + $0xe70] sm:$0xff]
        %v797 = vld [vmem:[%s267 + $0xe78] sm:$0xff]
        %v798 = vld [vmem:[%s267 + $0xe80] sm:$0xff]
        %v799 = vld [vmem:[%s267 + $0xe88] sm:$0xff]
        %v800 = vld [vmem:[%s267 + $0xe90] sm:$0xff]
        %v801 = vld [vmem:[%s267 + $0xe98] sm:$0xff]
        %v802 = vld [vmem:[%s267 + $0xea0] sm:$0xff]
        %v803 = vld [vmem:[%s267 + $0xea8] sm:$0xff]
        %v804 = vld [vmem:[%s267 + $0xeb0] sm:$0xff]
        %v805 = vld [vmem:[%s267 + $0xeb8] sm:$0xff]
        %v806 = vld [vmem:[%s267 + $0xec0] sm:$0xff]
        %v807 = vld [vmem:[%s267 + $0xec8] sm:$0xff]
        %v808 = vld [vmem:[%s267 + $0xed0] sm:$0xff]
        %v809 = vld [vmem:[%s267 + $0xed8] sm:$0xff]
        %v810 = vld [vmem:[%s267 + $0xee0] sm:$0xff]
        %v811 = vld [vmem:[%s267 + $0xee8] sm:$0xff]
        %v812 = vld [vmem:[%s267 + $0xef0] sm:$0xff]
        %v813 = vld [vmem:[%s267 + $0xef8] sm:$0xff]
        %v814 = vld [vmem:[%s267 + $0xf00] sm:$0xff]
        %v815 = vld [vmem:[%s267 + $0xf08] sm:$0xff]
        %v816 = vld [vmem:[%s267 + $0xf10] sm:$0xff]
        %v817 = vld [vmem:[%s267 + $0xf18] sm:$0xff]
        %v818 = vld [vmem:[%s267 + $0xf20] sm:$0xff]
        %v819 = vld [vmem:[%s267 + $0xf28] sm:$0xff]
        %v820 = vld [vmem:[%s267 + $0xf30] sm:$0xff]
        %v821 = vld [vmem:[%s267 + $0xf38] sm:$0xff]
        %v822 = vld [vmem:[%s267 + $0xf40] sm:$0xff]
        %v823 = vld [vmem:[%s267 + $0xf48] sm:$0xff]
        %v824 = vld [vmem:[%s267 + $0xf50] sm:$0xff]
        %v825 = vld [vmem:[%s267 + $0xf58] sm:$0xff]
        %v826 = vld [vmem:[%s267 + $0xf60] sm:$0xff]
        %v827 = vld [vmem:[%s267 + $0xf68] sm:$0xff]
        %v828 = vld [vmem:[%s267 + $0xf70] sm:$0xff]
        %v829 = vld [vmem:[%s267 + $0xf78] sm:$0xff]
        %v830 = vld [vmem:[%s267 + $0xf80] sm:$0xff]
        %v831 = vld [vmem:[%s267 + $0xf88] sm:$0xff]
        %v832 = vld [vmem:[%s267 + $0xf90] sm:$0xff]
        %v833 = vld [vmem:[%s267 + $0xf98] sm:$0xff]
        %v834 = vld [vmem:[%s267 + $0xfa0] sm:$0xff]
        %v835 = vld [vmem:[%s267 + $0xfa8] sm:$0xff]
        %v836 = vld [vmem:[%s267 + $0xfb0] sm:$0xff]
        %v837 = vld [vmem:[%s267 + $0xfb8] sm:$0xff]
        %v838 = vld [vmem:[%s267 + $0xfc0] sm:$0xff]
        %v839 = vld [vmem:[%s267 + $0xfc8] sm:$0xff]
        %v840 = vld [vmem:[%s267 + $0xfd0] sm:$0xff]
        %v841 = vld [vmem:[%s267 + $0xfd8] sm:$0xff]
        %v842 = vld [vmem:[%s267 + $0xfe0] sm:$0xff]
        %v843 = vld [vmem:[%s267 + $0xfe8] sm:$0xff]
        %v844 = vld [vmem:[%s267 + $0xff0] sm:$0xff]
        %v845 = vld [vmem:[%s267 + $0xff8] sm:$0xff]
        %v846 = vld [vmem:[%s276] sm:$0xf]
        %v848 = vlaneseq
        %v849 = vshrl.u32 %v848, 7
        %v850 = vsub.s32 0, %v849
        %v851 = vrot.slane %v846, %v850
        %v852 = vlaneseq
        %v853 = vshrl.u32 %v852, 7
        %v854 = vsub.s32 1, %v853
        %v855 = vrot.slane %v846, %v854
        %v856 = vlaneseq
        %v857 = vshrl.u32 %v856, 7
        %v858 = vsub.s32 2, %v857
        %v859 = vrot.slane %v846, %v858
        %v860 = vlaneseq
        %v861 = vshrl.u32 %v860, 7
        %v862 = vsub.s32 3, %v861
        %v863 = vrot.slane %v846, %v862
        %868 = vmatprep.subr.mxu0 %v335
        %869 = vmatpush1.msra.mxu0 %v334
        %870 = vmatprep.subr.mxu0 %v339
        %871 = vmatpush1.msra.mxu0 %v338
        %872 = vmatprep.subr.mxu0 %v343
        %873 = vmatpush1.msra.mxu0 %v342
        %874 = vmatprep.subr.mxu0 %v347
        %875 = vmatpush1.msra.mxu0 %v346
        %876 = vmatprep.subr.mxu0 %v351
        %877 = vmatpush1.msra.mxu0 %v350
        %878 = vmatprep.subr.mxu0 %v355
        %879 = vmatpush1.msra.mxu0 %v354
        %880 = vmatprep.subr.mxu0 %v359
        %881 = vmatpush1.msra.mxu0 %v358
        %882 = vmatprep.subr.mxu0 %v363
        %883 = vmatpush1.msra.mxu0 %v362
        %884 = vmatprep.subr.mxu0 %v367
        %885 = vmatpush1.msra.mxu0 %v366
        %886 = vmatprep.subr.mxu0 %v371
        %887 = vmatpush1.msra.mxu0 %v370
        %888 = vmatprep.subr.mxu0 %v375
        %889 = vmatpush1.msra.mxu0 %v374
        %890 = vmatprep.subr.mxu0 %v379
        %891 = vmatpush1.msra.mxu0 %v378
        %892 = vmatprep.subr.mxu0 %v383
        %893 = vmatpush1.msra.mxu0 %v382
        %894 = vmatprep.subr.mxu0 %v387
        %895 = vmatpush1.msra.mxu0 %v386
        %896 = vmatprep.subr.mxu0 %v391
        %897 = vmatpush1.msra.mxu0 %v390
        %898 = vmatprep.subr.mxu0 %v395
        %899 = vmatpush1.msra.mxu0 %v394
        %900 = vmatprep.subr.mxu0 %v399
        %901 = vmatpush1.msra.mxu0 %v398
        %902 = vmatprep.subr.mxu0 %v403
        %903 = vmatpush1.msra.mxu0 %v402
        %904 = vmatprep.subr.mxu0 %v407
        %905 = vmatpush1.msra.mxu0 %v406
        %906 = vmatprep.subr.mxu0 %v411
        %907 = vmatpush1.msra.mxu0 %v410
        %908 = vmatprep.subr.mxu0 %v415
        %909 = vmatpush1.msra.mxu0 %v414
        %910 = vmatprep.subr.mxu0 %v419
        %911 = vmatpush1.msra.mxu0 %v418
        %912 = vmatprep.subr.mxu0 %v423
        %913 = vmatpush1.msra.mxu0 %v422
        %914 = vmatprep.subr.mxu0 %v427
        %915 = vmatpush1.msra.mxu0 %v426
        %916 = vmatprep.subr.mxu0 %v431
        %917 = vmatpush1.msra.mxu0 %v430
        %918 = vmatprep.subr.mxu0 %v435
        %919 = vmatpush1.msra.mxu0 %v434
        %920 = vmatprep.subr.mxu0 %v439
        %921 = vmatpush1.msra.mxu0 %v438
        %922 = vmatprep.subr.mxu0 %v443
        %923 = vmatpush1.msra.mxu0 %v442
        %924 = vmatprep.subr.mxu0 %v447
        %925 = vmatpush1.msra.mxu0 %v446
        %926 = vmatprep.subr.mxu0 %v451
        %927 = vmatpush1.msra.mxu0 %v450
        %928 = vmatprep.subr.mxu0 %v455
        %929 = vmatpush1.msra.mxu0 %v454
        %930 = vmatprep.subr.mxu0 %v459
        %931 = vmatpush1.msra.mxu0 %v458
        %932 = vmatprep.mubr.f32.mxu0 %v327
        %933 = vmatmul.mubr.f32.gmra.mrb[0].mxu0 %v326
        %v934 = vpop.f32.mrb[0].mxu0
        %v935 = vadd.f32 %v851, %v934
        %v936 = vpop.f32.mrb[0].mxu0
        %v937 = vadd.f32 %v855, %v936
        %938 = vdwg.mxu0
        %939 = vmatprep.subr.mxu0 %v463
        %940 = vmatpush1.msra.mxu0 %v462
        %941 = vmatprep.subr.mxu0 %v467
        %942 = vmatpush1.msra.mxu0 %v466
        %943 = vmatprep.subr.mxu0 %v471
        %944 = vmatpush1.msra.mxu0 %v470
        %945 = vmatprep.subr.mxu0 %v475
        %946 = vmatpush1.msra.mxu0 %v474
        %947 = vmatprep.subr.mxu0 %v479
        %948 = vmatpush1.msra.mxu0 %v478
        %949 = vmatprep.subr.mxu0 %v483
        %950 = vmatpush1.msra.mxu0 %v482
        %951 = vmatprep.subr.mxu0 %v487
        %952 = vmatpush1.msra.mxu0 %v486
        %953 = vmatprep.subr.mxu0 %v491
        %954 = vmatpush1.msra.mxu0 %v490
        %955 = vmatprep.subr.mxu0 %v495
        %956 = vmatpush1.msra.mxu0 %v494
        %957 = vmatprep.subr.mxu0 %v499
        %958 = vmatpush1.msra.mxu0 %v498
        %959 = vmatprep.subr.mxu0 %v503
        %960 = vmatpush1.msra.mxu0 %v502
        %961 = vmatprep.subr.mxu0 %v507
        %962 = vmatpush1.msra.mxu0 %v506
        %963 = vmatprep.subr.mxu0 %v511
        %964 = vmatpush1.msra.mxu0 %v510
        %965 = vmatprep.subr.mxu0 %v515
        %966 = vmatpush1.msra.mxu0 %v514
        %967 = vmatprep.subr.mxu0 %v519
        %968 = vmatpush1.msra.mxu0 %v518
        %969 = vmatprep.subr.mxu0 %v523
        %970 = vmatpush1.msra.mxu0 %v522
        %971 = vmatprep.subr.mxu0 %v527
        %972 = vmatpush1.msra.mxu0 %v526
        %973 = vmatprep.subr.mxu0 %v531
        %974 = vmatpush1.msra.mxu0 %v530
        %975 = vmatprep.subr.mxu0 %v535
        %976 = vmatpush1.msra.mxu0 %v534
        %977 = vmatprep.subr.mxu0 %v539
        %978 = vmatpush1.msra.mxu0 %v538
        %979 = vmatprep.subr.mxu0 %v543
        %980 = vmatpush1.msra.mxu0 %v542
        %981 = vmatprep.subr.mxu0 %v547
        %982 = vmatpush1.msra.mxu0 %v546
        %983 = vmatprep.subr.mxu0 %v551
        %984 = vmatpush1.msra.mxu0 %v550
        %985 = vmatprep.subr.mxu0 %v555
        %986 = vmatpush1.msra.mxu0 %v554
        %987 = vmatprep.subr.mxu0 %v559
        %988 = vmatpush1.msra.mxu0 %v558
        %989 = vmatprep.subr.mxu0 %v563
        %990 = vmatpush1.msra.mxu0 %v562
        %991 = vmatprep.subr.mxu0 %v567
        %992 = vmatpush1.msra.mxu0 %v566
        %993 = vmatprep.subr.mxu0 %v571
        %994 = vmatpush1.msra.mxu0 %v570
        %995 = vmatprep.subr.mxu0 %v575
        %996 = vmatpush1.msra.mxu0 %v574
        %997 = vmatprep.subr.mxu0 %v579
        %998 = vmatpush1.msra.mxu0 %v578
        %999 = vmatprep.subr.mxu0 %v583
        %1000 = vmatpush1.msra.mxu0 %v582
        %1001 = vmatprep.subr.mxu0 %v587
        %1002 = vmatpush1.msra.mxu0 %v586
        %1003 = vmatprep.mubr.f32.mxu0 %v329
        %1004 = vmatmul.mubr.f32.gmra.mrb[0].mxu0 %v328
        %v1005 = vpop.f32.mrb[0].mxu0
        %v1006 = vadd.f32 %v935, %v1005
        %v1007 = vpop.f32.mrb[0].mxu0
        %v1008 = vadd.f32 %v937, %v1007
        %1009 = vdwg.mxu0
        %1010 = vmatprep.subr.mxu0 %v591
        %1011 = vmatpush1.msra.mxu0 %v590
        %1012 = vmatprep.subr.mxu0 %v595
        %1013 = vmatpush1.msra.mxu0 %v594
        %1014 = vmatprep.subr.mxu0 %v599
        %1015 = vmatpush1.msra.mxu0 %v598
        %1016 = vmatprep.subr.mxu0 %v603
        %1017 = vmatpush1.msra.mxu0 %v602
        %1018 = vmatprep.subr.mxu0 %v607
        %1019 = vmatpush1.msra.mxu0 %v606
        %1020 = vmatprep.subr.mxu0 %v611
        %1021 = vmatpush1.msra.mxu0 %v610
        %1022 = vmatprep.subr.mxu0 %v615
        %1023 = vmatpush1.msra.mxu0 %v614
        %1024 = vmatprep.subr.mxu0 %v619
        %1025 = vmatpush1.msra.mxu0 %v618
        %1026 = vmatprep.subr.mxu0 %v623
        %1027 = vmatpush1.msra.mxu0 %v622
        %1028 = vmatprep.subr.mxu0 %v627
        %1029 = vmatpush1.msra.mxu0 %v626
        %1030 = vmatprep.subr.mxu0 %v631
        %1031 = vmatpush1.msra.mxu0 %v630
        %1032 = vmatprep.subr.mxu0 %v635
        %1033 = vmatpush1.msra.mxu0 %v634
        %1034 = vmatprep.subr.mxu0 %v639
        %1035 = vmatpush1.msra.mxu0 %v638
        %1036 = vmatprep.subr.mxu0 %v643
        %1037 = vmatpush1.msra.mxu0 %v642
        %1038 = vmatprep.subr.mxu0 %v647
        %1039 = vmatpush1.msra.mxu0 %v646
        %1040 = vmatprep.subr.mxu0 %v651
        %1041 = vmatpush1.msra.mxu0 %v650
        %1042 = vmatprep.subr.mxu0 %v655
        %1043 = vmatpush1.msra.mxu0 %v654
        %1044 = vmatprep.subr.mxu0 %v659
        %1045 = vmatpush1.msra.mxu0 %v658
        %1046 = vmatprep.subr.mxu0 %v663
        %1047 = vmatpush1.msra.mxu0 %v662
        %1048 = vmatprep.subr.mxu0 %v667
        %1049 = vmatpush1.msra.mxu0 %v666
        %1050 = vmatprep.subr.mxu0 %v671
        %1051 = vmatpush1.msra.mxu0 %v670
        %1052 = vmatprep.subr.mxu0 %v675
        %1053 = vmatpush1.msra.mxu0 %v674
        %1054 = vmatprep.subr.mxu0 %v679
        %1055 = vmatpush1.msra.mxu0 %v678
        %1056 = vmatprep.subr.mxu0 %v683
        %1057 = vmatpush1.msra.mxu0 %v682
        %1058 = vmatprep.subr.mxu0 %v687
        %1059 = vmatpush1.msra.mxu0 %v686
        %1060 = vmatprep.subr.mxu0 %v691
        %1061 = vmatpush1.msra.mxu0 %v690
        %1062 = vmatprep.subr.mxu0 %v695
        %1063 = vmatpush1.msra.mxu0 %v694
        %1064 = vmatprep.subr.mxu0 %v699
        %1065 = vmatpush1.msra.mxu0 %v698
        %1066 = vmatprep.subr.mxu0 %v703
        %1067 = vmatpush1.msra.mxu0 %v702
        %1068 = vmatprep.subr.mxu0 %v707
        %1069 = vmatpush1.msra.mxu0 %v706
        %1070 = vmatprep.subr.mxu0 %v711
        %1071 = vmatpush1.msra.mxu0 %v710
        %1072 = vmatprep.subr.mxu0 %v715
        %1073 = vmatpush1.msra.mxu0 %v714
        %1074 = vmatprep.mubr.f32.mxu0 %v331
        %1075 = vmatmul.mubr.f32.gmra.mrb[0].mxu0 %v330
        %v1076 = vpop.f32.mrb[0].mxu0
        %v1077 = vadd.f32 %v1006, %v1076
        %v1078 = vpop.f32.mrb[0].mxu0
        %v1079 = vadd.f32 %v1008, %v1078
        %1080 = vdwg.mxu0
        %1081 = vmatprep.subr.mxu0 %v719
        %1082 = vmatpush1.msra.mxu0 %v718
        %1083 = vmatprep.subr.mxu0 %v723
        %1084 = vmatpush1.msra.mxu0 %v722
        %1085 = vmatprep.subr.mxu0 %v727
        %1086 = vmatpush1.msra.mxu0 %v726
        %1087 = vmatprep.subr.mxu0 %v731
        %1088 = vmatpush1.msra.mxu0 %v730
        %1089 = vmatprep.subr.mxu0 %v735
        %1090 = vmatpush1.msra.mxu0 %v734
        %1091 = vmatprep.subr.mxu0 %v739
        %1092 = vmatpush1.msra.mxu0 %v738
        %1093 = vmatprep.subr.mxu0 %v743
        %1094 = vmatpush1.msra.mxu0 %v742
        %1095 = vmatprep.subr.mxu0 %v747
        %1096 = vmatpush1.msra.mxu0 %v746
        %1097 = vmatprep.subr.mxu0 %v751
        %1098 = vmatpush1.msra.mxu0 %v750
        %1099 = vmatprep.subr.mxu0 %v755
        %1100 = vmatpush1.msra.mxu0 %v754
        %1101 = vmatprep.subr.mxu0 %v759
        %1102 = vmatpush1.msra.mxu0 %v758
        %1103 = vmatprep.subr.mxu0 %v763
        %1104 = vmatpush1.msra.mxu0 %v762
        %1105 = vmatprep.subr.mxu0 %v767
        %1106 = vmatpush1.msra.mxu0 %v766
        %1107 = vmatprep.subr.mxu0 %v771
        %1108 = vmatpush1.msra.mxu0 %v770
        %1109 = vmatprep.subr.mxu0 %v775
        %1110 = vmatpush1.msra.mxu0 %v774
        %1111 = vmatprep.subr.mxu0 %v779
        %1112 = vmatpush1.msra.mxu0 %v778
        %1113 = vmatprep.subr.mxu0 %v783
        %1114 = vmatpush1.msra.mxu0 %v782
        %1115 = vmatprep.subr.mxu0 %v787
        %1116 = vmatpush1.msra.mxu0 %v786
        %1117 = vmatprep.subr.mxu0 %v791
        %1118 = vmatpush1.msra.mxu0 %v790
        %1119 = vmatprep.subr.mxu0 %v795
        %1120 = vmatpush1.msra.mxu0 %v794
        %1121 = vmatprep.subr.mxu0 %v799
        %1122 = vmatpush1.msra.mxu0 %v798
        %1123 = vmatprep.subr.mxu0 %v803
        %1124 = vmatpush1.msra.mxu0 %v802
        %1125 = vmatprep.subr.mxu0 %v807
        %1126 = vmatpush1.msra.mxu0 %v806
        %1127 = vmatprep.subr.mxu0 %v811
        %1128 = vmatpush1.msra.mxu0 %v810
        %1129 = vmatprep.subr.mxu0 %v815
        %1130 = vmatpush1.msra.mxu0 %v814
        %1131 = vmatprep.subr.mxu0 %v819
        %1132 = vmatpush1.msra.mxu0 %v818
        %1133 = vmatprep.subr.mxu0 %v823
        %1134 = vmatpush1.msra.mxu0 %v822
        %1135 = vmatprep.subr.mxu0 %v827
        %1136 = vmatpush1.msra.mxu0 %v826
        %1137 = vmatprep.subr.mxu0 %v831
        %1138 = vmatpush1.msra.mxu0 %v830
        %1139 = vmatprep.subr.mxu0 %v835
        %1140 = vmatpush1.msra.mxu0 %v834
        %1141 = vmatprep.subr.mxu0 %v839
        %1142 = vmatpush1.msra.mxu0 %v838
        %1143 = vmatprep.subr.mxu0 %v843
        %1144 = vmatpush1.msra.mxu0 %v842
        %1145 = vmatprep.mubr.f32.mxu0 %v333
        %1146 = vmatmul.mubr.f32.gmra.mrb[0].mxu0 %v332
        %v1147 = vpop.f32.mrb[0].mxu0
        %v1148 = vadd.f32 %v1077, %v1147
        %v1149 = vpop.f32.mrb[0].mxu0
        %v1150 = vadd.f32 %v1079, %v1149
        %1151 = vdwg.mxu0
        %1152 = vmatprep.subr.mxu0 %v337
        %1153 = vmatpush1.msra.mxu0 %v336
        %1154 = vmatprep.subr.mxu0 %v341
        %1155 = vmatpush1.msra.mxu0 %v340
        %1156 = vmatprep.subr.mxu0 %v345
        %1157 = vmatpush1.msra.mxu0 %v344
        %1158 = vmatprep.subr.mxu0 %v349
        %1159 = vmatpush1.msra.mxu0 %v348
        %1160 = vmatprep.subr.mxu0 %v353
        %1161 = vmatpush1.msra.mxu0 %v352
        %1162 = vmatprep.subr.mxu0 %v357
        %1163 = vmatpush1.msra.mxu0 %v356
        %1164 = vmatprep.subr.mxu0 %v361
        %1165 = vmatpush1.msra.mxu0 %v360
        %1166 = vmatprep.subr.mxu0 %v365
        %1167 = vmatpush1.msra.mxu0 %v364
        %1168 = vmatprep.subr.mxu0 %v369
        %1169 = vmatpush1.msra.mxu0 %v368
        %1170 = vmatprep.subr.mxu0 %v373
        %1171 = vmatpush1.msra.mxu0 %v372
        %1172 = vmatprep.subr.mxu0 %v377
        %1173 = vmatpush1.msra.mxu0 %v376
        %1174 = vmatprep.subr.mxu0 %v381
        %1175 = vmatpush1.msra.mxu0 %v380
        %1176 = vmatprep.subr.mxu0 %v385
        %1177 = vmatpush1.msra.mxu0 %v384
        %1178 = vmatprep.subr.mxu0 %v389
        %1179 = vmatpush1.msra.mxu0 %v388
        %1180 = vmatprep.subr.mxu0 %v393
        %1181 = vmatpush1.msra.mxu0 %v392
        %1182 = vmatprep.subr.mxu0 %v397
        %1183 = vmatpush1.msra.mxu0 %v396
        %1184 = vmatprep.subr.mxu0 %v401
        %1185 = vmatpush1.msra.mxu0 %v400
        %1186 = vmatprep.subr.mxu0 %v405
        %1187 = vmatpush1.msra.mxu0 %v404
        %1188 = vmatprep.subr.mxu0 %v409
        %1189 = vmatpush1.msra.mxu0 %v408
        %1190 = vmatprep.subr.mxu0 %v413
        %1191 = vmatpush1.msra.mxu0 %v412
        %1192 = vmatprep.subr.mxu0 %v417
        %1193 = vmatpush1.msra.mxu0 %v416
        %1194 = vmatprep.subr.mxu0 %v421
        %1195 = vmatpush1.msra.mxu0 %v420
        %1196 = vmatprep.subr.mxu0 %v425
        %1197 = vmatpush1.msra.mxu0 %v424
        %1198 = vmatprep.subr.mxu0 %v429
        %1199 = vmatpush1.msra.mxu0 %v428
        %1200 = vmatprep.subr.mxu0 %v433
        %1201 = vmatpush1.msra.mxu0 %v432
        %1202 = vmatprep.subr.mxu0 %v437
        %1203 = vmatpush1.msra.mxu0 %v436
        %1204 = vmatprep.subr.mxu0 %v441
        %1205 = vmatpush1.msra.mxu0 %v440
        %1206 = vmatprep.subr.mxu0 %v445
        %1207 = vmatpush1.msra.mxu0 %v444
        %1208 = vmatprep.subr.mxu0 %v449
        %1209 = vmatpush1.msra.mxu0 %v448
        %1210 = vmatprep.subr.mxu0 %v453
        %1211 = vmatpush1.msra.mxu0 %v452
        %1212 = vmatprep.subr.mxu0 %v457
        %1213 = vmatpush1.msra.mxu0 %v456
        %1214 = vmatprep.subr.mxu0 %v461
        %1215 = vmatpush1.msra.mxu0 %v460
        %1216 = vmatprep.mubr.f32.mxu0 %v327
        %1217 = vmatmul.mubr.f32.gmra.mrb[0].mxu0 %v326
        %v1218 = vpop.f32.mrb[0].mxu0
        %v1219 = vadd.f32 %v859, %v1218
        %v1220 = vpop.f32.mrb[0].mxu0
        %v1221 = vadd.f32 %v863, %v1220
        %1222 = vdwg.mxu0
        %1223 = vmatprep.subr.mxu0 %v465
        %1224 = vmatpush1.msra.mxu0 %v464
        %1225 = vmatprep.subr.mxu0 %v469
        %1226 = vmatpush1.msra.mxu0 %v468
        %1227 = vmatprep.subr.mxu0 %v473
        %1228 = vmatpush1.msra.mxu0 %v472
        %1229 = vmatprep.subr.mxu0 %v477
        %1230 = vmatpush1.msra.mxu0 %v476
        %1231 = vmatprep.subr.mxu0 %v481
        %1232 = vmatpush1.msra.mxu0 %v480
        %1233 = vmatprep.subr.mxu0 %v485
        %1234 = vmatpush1.msra.mxu0 %v484
        %1235 = vmatprep.subr.mxu0 %v489
        %1236 = vmatpush1.msra.mxu0 %v488
        %1237 = vmatprep.subr.mxu0 %v493
        %1238 = vmatpush1.msra.mxu0 %v492
        %1239 = vmatprep.subr.mxu0 %v497
        %1240 = vmatpush1.msra.mxu0 %v496
        %1241 = vmatprep.subr.mxu0 %v501
        %1242 = vmatpush1.msra.mxu0 %v500
        %1243 = vmatprep.subr.mxu0 %v505
        %1244 = vmatpush1.msra.mxu0 %v504
        %1245 = vmatprep.subr.mxu0 %v509
        %1246 = vmatpush1.msra.mxu0 %v508
        %1247 = vmatprep.subr.mxu0 %v513
        %1248 = vmatpush1.msra.mxu0 %v512
        %1249 = vmatprep.subr.mxu0 %v517
        %1250 = vmatpush1.msra.mxu0 %v516
        %1251 = vmatprep.subr.mxu0 %v521
        %1252 = vmatpush1.msra.mxu0 %v520
        %1253 = vmatprep.subr.mxu0 %v525
        %1254 = vmatpush1.msra.mxu0 %v524
        %1255 = vmatprep.subr.mxu0 %v529
        %1256 = vmatpush1.msra.mxu0 %v528
        %1257 = vmatprep.subr.mxu0 %v533
        %1258 = vmatpush1.msra.mxu0 %v532
        %1259 = vmatprep.subr.mxu0 %v537
        %1260 = vmatpush1.msra.mxu0 %v536
        %1261 = vmatprep.subr.mxu0 %v541
        %1262 = vmatpush1.msra.mxu0 %v540
        %1263 = vmatprep.subr.mxu0 %v545
        %1264 = vmatpush1.msra.mxu0 %v544
        %1265 = vmatprep.subr.mxu0 %v549
        %1266 = vmatpush1.msra.mxu0 %v548
        %1267 = vmatprep.subr.mxu0 %v553
        %1268 = vmatpush1.msra.mxu0 %v552
        %1269 = vmatprep.subr.mxu0 %v557
        %1270 = vmatpush1.msra.mxu0 %v556
        %1271 = vmatprep.subr.mxu0 %v561
        %1272 = vmatpush1.msra.mxu0 %v560
        %1273 = vmatprep.subr.mxu0 %v565
        %1274 = vmatpush1.msra.mxu0 %v564
        %1275 = vmatprep.subr.mxu0 %v569
        %1276 = vmatpush1.msra.mxu0 %v568
        %1277 = vmatprep.subr.mxu0 %v573
        %1278 = vmatpush1.msra.mxu0 %v572
        %1279 = vmatprep.subr.mxu0 %v577
        %1280 = vmatpush1.msra.mxu0 %v576
        %1281 = vmatprep.subr.mxu0 %v581
        %1282 = vmatpush1.msra.mxu0 %v580
        %1283 = vmatprep.subr.mxu0 %v585
        %1284 = vmatpush1.msra.mxu0 %v584
        %1285 = vmatprep.subr.mxu0 %v589
        %1286 = vmatpush1.msra.mxu0 %v588
        %1287 = vmatprep.mubr.f32.mxu0 %v329
        %1288 = vmatmul.mubr.f32.gmra.mrb[0].mxu0 %v328
        %v1289 = vpop.f32.mrb[0].mxu0
        %v1290 = vadd.f32 %v1219, %v1289
        %v1291 = vpop.f32.mrb[0].mxu0
        %v1292 = vadd.f32 %v1221, %v1291
        %1293 = vdwg.mxu0
        %1294 = vmatprep.subr.mxu0 %v593
        %1295 = vmatpush1.msra.mxu0 %v592
        %1296 = vmatprep.subr.mxu0 %v597
        %1297 = vmatpush1.msra.mxu0 %v596
        %1298 = vmatprep.subr.mxu0 %v601
        %1299 = vmatpush1.msra.mxu0 %v600
        %1300 = vmatprep.subr.mxu0 %v605
        %1301 = vmatpush1.msra.mxu0 %v604
        %1302 = vmatprep.subr.mxu0 %v609
        %1303 = vmatpush1.msra.mxu0 %v608
        %1304 = vmatprep.subr.mxu0 %v613
        %1305 = vmatpush1.msra.mxu0 %v612
        %1306 = vmatprep.subr.mxu0 %v617
        %1307 = vmatpush1.msra.mxu0 %v616
        %1308 = vmatprep.subr.mxu0 %v621
        %1309 = vmatpush1.msra.mxu0 %v620
        %1310 = vmatprep.subr.mxu0 %v625
        %1311 = vmatpush1.msra.mxu0 %v624
        %1312 = vmatprep.subr.mxu0 %v629
        %1313 = vmatpush1.msra.mxu0 %v628
        %1314 = vmatprep.subr.mxu0 %v633
        %1315 = vmatpush1.msra.mxu0 %v632
        %1316 = vmatprep.subr.mxu0 %v637
        %1317 = vmatpush1.msra.mxu0 %v636
        %1318 = vmatprep.subr.mxu0 %v641
        %1319 = vmatpush1.msra.mxu0 %v640
        %1320 = vmatprep.subr.mxu0 %v645
        %1321 = vmatpush1.msra.mxu0 %v644
        %1322 = vmatprep.subr.mxu0 %v649
        %1323 = vmatpush1.msra.mxu0 %v648
        %1324 = vmatprep.subr.mxu0 %v653
        %1325 = vmatpush1.msra.mxu0 %v652
        %1326 = vmatprep.subr.mxu0 %v657
        %1327 = vmatpush1.msra.mxu0 %v656
        %1328 = vmatprep.subr.mxu0 %v661
        %1329 = vmatpush1.msra.mxu0 %v660
        %1330 = vmatprep.subr.mxu0 %v665
        %1331 = vmatpush1.msra.mxu0 %v664
        %1332 = vmatprep.subr.mxu0 %v669
        %1333 = vmatpush1.msra.mxu0 %v668
        %1334 = vmatprep.subr.mxu0 %v673
        %1335 = vmatpush1.msra.mxu0 %v672
        %1336 = vmatprep.subr.mxu0 %v677
        %1337 = vmatpush1.msra.mxu0 %v676
        %1338 = vmatprep.subr.mxu0 %v681
        %1339 = vmatpush1.msra.mxu0 %v680
        %1340 = vmatprep.subr.mxu0 %v685
        %1341 = vmatpush1.msra.mxu0 %v684
        %1342 = vmatprep.subr.mxu0 %v689
        %1343 = vmatpush1.msra.mxu0 %v688
        %1344 = vmatprep.subr.mxu0 %v693
        %1345 = vmatpush1.msra.mxu0 %v692
        %1346 = vmatprep.subr.mxu0 %v697
        %1347 = vmatpush1.msra.mxu0 %v696
        %1348 = vmatprep.subr.mxu0 %v701
        %1349 = vmatpush1.msra.mxu0 %v700
        %1350 = vmatprep.subr.mxu0 %v705
        %1351 = vmatpush1.msra.mxu0 %v704
        %1352 = vmatprep.subr.mxu0 %v709
        %1353 = vmatpush1.msra.mxu0 %v708
        %1354 = vmatprep.subr.mxu0 %v713
        %1355 = vmatpush1.msra.mxu0 %v712
        %1356 = vmatprep.subr.mxu0 %v717
        %1357 = vmatpush1.msra.mxu0 %v716
        %1358 = vmatprep.mubr.f32.mxu0 %v331
        %1359 = vmatmul.mubr.f32.gmra.mrb[0].mxu0 %v330
        %v1360 = vpop.f32.mrb[0].mxu0
        %v1361 = vadd.f32 %v1290, %v1360
        %v1362 = vpop.f32.mrb[0].mxu0
        %v1363 = vadd.f32 %v1292, %v1362
        %1364 = vdwg.mxu0
        %1365 = vmatprep.subr.mxu0 %v721
        %1366 = vmatpush1.msra.mxu0 %v720
        %1367 = vmatprep.subr.mxu0 %v725
        %1368 = vmatpush1.msra.mxu0 %v724
        %1369 = vmatprep.subr.mxu0 %v729
        %1370 = vmatpush1.msra.mxu0 %v728
        %1371 = vmatprep.subr.mxu0 %v733
        %1372 = vmatpush1.msra.mxu0 %v732
        %1373 = vmatprep.subr.mxu0 %v737
        %1374 = vmatpush1.msra.mxu0 %v736
        %1375 = vmatprep.subr.mxu0 %v741
        %1376 = vmatpush1.msra.mxu0 %v740
        %1377 = vmatprep.subr.mxu0 %v745
        %1378 = vmatpush1.msra.mxu0 %v744
        %1379 = vmatprep.subr.mxu0 %v749
        %1380 = vmatpush1.msra.mxu0 %v748
        %1381 = vmatprep.subr.mxu0 %v753
        %1382 = vmatpush1.msra.mxu0 %v752
        %1383 = vmatprep.subr.mxu0 %v757
        %1384 = vmatpush1.msra.mxu0 %v756
        %1385 = vmatprep.subr.mxu0 %v761
        %1386 = vmatpush1.msra.mxu0 %v760
        %1387 = vmatprep.subr.mxu0 %v765
        %1388 = vmatpush1.msra.mxu0 %v764
        %1389 = vmatprep.subr.mxu0 %v769
        %1390 = vmatpush1.msra.mxu0 %v768
        %1391 = vmatprep.subr.mxu0 %v773
        %1392 = vmatpush1.msra.mxu0 %v772
        %1393 = vmatprep.subr.mxu0 %v777
        %1394 = vmatpush1.msra.mxu0 %v776
        %1395 = vmatprep.subr.mxu0 %v781
        %1396 = vmatpush1.msra.mxu0 %v780
        %1397 = vmatprep.subr.mxu0 %v785
        %1398 = vmatpush1.msra.mxu0 %v784
        %1399 = vmatprep.subr.mxu0 %v789
        %1400 = vmatpush1.msra.mxu0 %v788
        %1401 = vmatprep.subr.mxu0 %v793
        %1402 = vmatpush1.msra.mxu0 %v792
        %1403 = vmatprep.subr.mxu0 %v797
        %1404 = vmatpush1.msra.mxu0 %v796
        %1405 = vmatprep.subr.mxu0 %v801
        %1406 = vmatpush1.msra.mxu0 %v800
        %1407 = vmatprep.subr.mxu0 %v805
        %1408 = vmatpush1.msra.mxu0 %v804
        %1409 = vmatprep.subr.mxu0 %v809
        %1410 = vmatpush1.msra.mxu0 %v808
        %1411 = vmatprep.subr.mxu0 %v813
        %1412 = vmatpush1.msra.mxu0 %v812
        %1413 = vmatprep.subr.mxu0 %v817
        %1414 = vmatpush1.msra.mxu0 %v816
        %1415 = vmatprep.subr.mxu0 %v821
        %1416 = vmatpush1.msra.mxu0 %v820
        %1417 = vmatprep.subr.mxu0 %v825
        %1418 = vmatpush1.msra.mxu0 %v824
        %1419 = vmatprep.subr.mxu0 %v829
        %1420 = vmatpush1.msra.mxu0 %v828
        %1421 = vmatprep.subr.mxu0 %v833
        %1422 = vmatpush1.msra.mxu0 %v832
        %1423 = vmatprep.subr.mxu0 %v837
        %1424 = vmatpush1.msra.mxu0 %v836
        %1425 = vmatprep.subr.mxu0 %v841
        %1426 = vmatpush1.msra.mxu0 %v840
        %1427 = vmatprep.subr.mxu0 %v845
        %1428 = vmatpush1.msra.mxu0 %v844
        %1429 = vmatprep.mubr.f32.mxu0 %v333
        %1430 = vmatmul.mubr.f32.gmra.mrb[0].mxu0 %v332
        %v1431 = vpop.f32.mrb[0].mxu0
        %v1432 = vadd.f32 %v1361, %v1431
        %v1433 = vpop.f32.mrb[0].mxu0
        %v1434 = vadd.f32 %v1363, %v1433
        %1435 = vdwg.mxu0
        %v1436 = vtanh.pop %v1148
        %v1437 = vtanh.pop %v1150
        %v1438 = vtanh.pop %v1432
        %v1439 = vtanh.pop %v1434
        %v1444 = vrot.slane %v1436, 4
        %v1445 = vrot.slane %v1437, 4
        %v1446 = vrot.slane %v1438, 4
        %v1447 = vrot.slane %v1439, 4
        %v1452 = vsub.f32 %v1436, %v1444
        %v1453 = vsub.f32 %v1437, %v1445
        %v1454 = vsub.f32 %v1438, %v1446
        %v1455 = vsub.f32 %v1439, %v1447
        %v1456 = vand.u32 2147483647, %v1452
        %v1457 = vand.u32 2147483647, %v1453
        %v1458 = vand.u32 2147483647, %v1454
        %v1459 = vand.u32 2147483647, %v1455
        %v1460 = vld [vmem:[#allocation2] sm:$0xf]
        %v1461 = vld [vmem:[%s285] sm:$0xf]
        %v1463 = vlaneseq
        %v1464 = vshrl.u32 %v1463, 7
        %v1465 = vsub.s32 0, %v1464
        %v1466 = vrot.slane %v1461, %v1465
        %v1467 = vlaneseq
        %v1468 = vshrl.u32 %v1467, 7
        %v1469 = vsub.s32 1, %v1468
        %v1470 = vrot.slane %v1461, %v1469
        %v1471 = vlaneseq
        %v1472 = vshrl.u32 %v1471, 7
        %v1473 = vsub.s32 2, %v1472
        %v1474 = vrot.slane %v1461, %v1473
        %v1475 = vlaneseq
        %v1476 = vshrl.u32 %v1475, 7
        %v1477 = vsub.s32 3, %v1476
        %v1478 = vrot.slane %v1461, %v1477
        %v1483 = vmul.f32 %v1456, %v1466
        %v1484 = vmul.f32 %v1457, %v1470
        %v1485 = vmul.f32 %v1458, %v1474
        %v1486 = vmul.f32 %v1459, %v1478
        %vm1487 = vcmask 1043456
        %v1488 = vsel %vm1487, %v1483, 0.0
        %v1489 = vsel %vm1487, %v1484, 0.0
        %v1490 = vadd.f32 %v1488, %v1489
        %v1491 = vsel %vm1487, %v1485, 0.0
        %v1492 = vadd.f32 %v1490, %v1491
        %v1493 = vsel %vm1487, %v1486, 0.0
        %v1494 = vadd.f32 %v1492, %v1493
        %1495 = vadd.xlane.f32.xlu0 %v1494
        %v1496 = vpop.xlane.xlu0 %1495
        %v1497 = vadd.f32 %v1460, %v1496
        %vm1498 = vcmask 3072
        %1499 = vst.msk [vmem:[#allocation2] sm:$0xf] %vm1498, %v1497
        %p1500 = scmp.eq.s32.totalorder %s24, 1
        // Predicated region
        $region61: #{tpu_custom_call.1} parent=39 // pred_check
          %p1501 = pneg %p1500
        $region62: #{tpu_custom_call.1} parent=39 // pred_check_branch
          %1503 = sbr.rel (%p1501) target = $region64
        $region63: #{tpu_custom_call.1} parent=39 // pred_region
          %v1504 = vld [vmem:[#allocation2] sm:$0xf]
          %s1505 = sld [smem:[#allocation3]]
          %v1506 = vstv %s1505
          %v1507 = vadd.f32 %v1504, %v1506
          %v1508 = vxor.u32 %v1507, 2147483648
          %v1509 = vmul.f32 %v1508, 1.442695
          %v1510 = vpow.pop %v1509
          %v1511 = vadd.f32 %v1510, 1.0
          %v1512 = vrcp.pop %v1511
          %v1513 = vmul.f32 1.0, %v1512
          %vm1514 = vcmask 1024
          %1515 = vst.msk [vmem:[%s5] sm:$0x3] %vm1514, %v1513
        $region64: #{tpu_custom_call.1} parent=39 // pred_fallthru
          _
        // Predicated region
        $region65: #{tpu_custom_call.1} parent=39 // pred_check
          %p1516 = pneg %p157
        $region66: #{tpu_custom_call.1} parent=39 // pred_check_branch
          %1518 = sbr.rel (%p1516) target = $region68
        $region67: #{tpu_custom_call.1} parent=39 // pred_region
          _
        $region68: #{tpu_custom_call.1} parent=39 // pred_fallthru
          _
        // Predicated region
        $region69: #{tpu_custom_call.1} parent=39 // pred_check
          %p1519 = pneg %p157
        $region70: #{tpu_custom_call.1} parent=39 // pred_check_branch
          %1521 = sbr.rel (%p1519) target = $region72
        $region71: #{tpu_custom_call.1} parent=39 // pred_region
          _
        $region72: #{tpu_custom_call.1} parent=39 // pred_fallthru
          _
      $region40: #{tpu_custom_call.1} parent=5 // pred_fallthru
        _
      %p1522 = scmp.le.s32.totalorder 2, %s19
      // Predicated region
      $region73: #{tpu_custom_call.1} parent=5 // pred_check
        %p1523 = pneg %p1522
      $region74: #{tpu_custom_call.1} parent=5 // pred_check_branch
        %1525 = sbr.rel (%p1523) target = $region76
      $region75: #{tpu_custom_call.1} parent=5 // pred_region
        %s1526 = ssub.s32 %s19, 2
      $region76: #{tpu_custom_call.1} parent=5 // pred_fallthru
        _
    $region6: #{tpu_custom_call.1} parent=1 // loop_footer
      %s23 = sadd.s32 1, %s19
    $region7: #{tpu_custom_call.1} parent=1 // loop_footer_branch
      %18 = sbr.rel target = $region3
    $region8: #{tpu_custom_call.1} parent=1 // loop_exit
      _
    %1527 = vsyncpa [#allocation5], 1
    %s1528 = scalar_lea.sflag [#allocation5], 1
    %1529 = vsyncpa %s1528, 1
    %1530 = vsyncpa [#allocation7], 1
    %s1531 = scalar_lea.sflag [#allocation7], 1
    %1532 = vsyncpa %s1531, 1
    %1533 = vsyncpa [#allocation10], 1
    %s1534 = scalar_lea.sflag [#allocation10], 1
    %1535 = vsyncpa %s1534, 1

</llo_original>
